<compile_context>
chip_gen: v7x
topology: tpu7x:2x2x1
jax: 0.10.0
libtpu: 0.0.40
codegen_flags: <defaults>
</compile_context>

<pallas_src>
import numpy as np
import jax
import jax.numpy as jnp
from jax.experimental import pallas as pl
from jax.experimental.pallas import tpu as pltpu


def _make_kernel(B, D, student_temp, n_terms):
    inv_stemp = 1.0 / float(student_temp)          # folded at trace time
    neg_inv_scale = -1.0 / (float(B) * float(n_terms))

    def log_softmax(x):
        x = x - jnp.max(x, axis=-1, keepdims=True)
        return x - jnp.log(jnp.sum(jnp.exp(x), axis=-1, keepdims=True))

    def kernel(inv_temp_ref, w_stu_ref, w_sgv_ref, teacher_ref, student_ref,
               sgv_ref, center_ref, loss_part_ref, center_part_ref):
        # ---- teacher softmax: softmax((teacher - center) * (1/temp), axis=-1) ----
        inv_temp = inv_temp_ref[0]                       # scalar from SMEM
        c = center_ref[...][None]                        # (1, 1, D)
        t = (teacher_ref[...] - c) * inv_temp            # (TB, ntcrops, D)
        t = t - jnp.max(t, axis=-1, keepdims=True)
        et = jnp.exp(t)
        q = et * pl.reciprocal(jnp.sum(et, axis=-1, keepdims=True))

        # ---- student / same-global-view log-softmax (reciprocal-mult scale) ----
        logs_stu = log_softmax(student_ref[...] * inv_stemp)   # (TB, ncrops, D)
        logs_sgv = log_softmax(sgv_ref[...] * inv_stemp)       # (TB, 4, D)

        # ---- all CE terms as batched MXU contractions over D (batch = rows) ----
        s_stu = jnp.einsum('btd,bvd->btv', q, logs_stu,
                           preferred_element_type=jnp.float32)  # (TB, ntcrops, ncrops)
        s_sgv = jnp.einsum('btd,bvd->btv', q, logs_sgv,
                           preferred_element_type=jnp.float32)  # (TB, ntcrops, 4)

        # (iq, v) pair selection as a tiny mask; single final reduction.
        p1 = jnp.sum(s_stu * w_stu_ref[...][None], axis=(0, 1, 2), keepdims=True)
        p2 = jnp.sum(s_sgv * w_sgv_ref[...][None], axis=(0, 1, 2), keepdims=True)
        part = (p1 + p2) * neg_inv_scale                        # (1, 1, 1)

        # lane-dense per-tile partial loss (unmasked store, reduced in wrapper)
        loss_part_ref[...] = jnp.broadcast_to(part, (1, 1, 128)).astype(jnp.float32)

        # per-tile partial (unnormalized) batch-center sum over teacher rows
        center_part_ref[...] = jnp.sum(
            jnp.sum(teacher_ref[...], axis=1, keepdims=True), axis=0, keepdims=True)

    return kernel


def sgit_dino_loss(student_output, teacher_output, same_global_view_output,
                   center, epoch, *, ncrops, ntcrops, teacher_temp_schedule,
                   student_temp=0.1, center_momentum=0.9, batch_tile=8):
    rows_s, D = student_output.shape
    B = rows_s // ncrops
    assert teacher_output.shape == (ntcrops * B, D)
    assert same_global_view_output.shape == (4 * B, D)
    assert center.shape == (1, D)
    assert D % 128 == 0, "out_dim must be a multiple of 128 (lane dim)"
    # TODO(synk): for production out_dim (4K-65K) add D-chunked (online) softmax
    # tiling so each grid step fits the 64 MiB v7x VMEM budget.

    TB = batch_tile if (B % batch_tile == 0) else B
    num_tiles = B // TB

    # Host-side layout plumbing: crops to a middle axis, batch leading, so the
    # kernel indexes crops by a full-tile leading/middle axis (no sublane-
    # crossing 4-row slices) and the einsum is batch-major like flash-attn.
    teacher3 = teacher_output.reshape(ntcrops, B, D).transpose(1, 0, 2)      # (B, ntcrops, D)
    student3 = student_output.reshape(ncrops, B, D).transpose(1, 0, 2)       # (B, ncrops, D)
    sgv3 = same_global_view_output.reshape(4, B, D).transpose(1, 0, 2)       # (B, 4, D)

    # Compile-time (iq, v) pair-selection weights mirroring the reference loop.
    w_stu = np.zeros((ntcrops, ncrops), np.float32)
    w_sgv = np.zeros((ntcrops, 4), np.float32)
    n_terms = 0
    for iq in range(ntcrops):
        for v in range(ncrops):
            if v == iq:
                w_sgv[iq, v] = 1.0
                w_sgv[iq, v + 2] = 1.0
                n_terms += 2
            else:
                w_stu[iq, v] = 1.0
                n_terms += 1

    # 1/temp as an SMEM scalar (no padded (1,1) VMEM tile, no in-kernel divide).
    inv_temp = jnp.asarray([1.0 / float(teacher_temp_schedule[epoch])], dtype=jnp.float32)

    kernel = _make_kernel(B, D, float(student_temp), n_terms)

    loss_parts, center_parts = pl.pallas_call(
        kernel,
        out_shape=(jax.ShapeDtypeStruct((num_tiles, 1, 128), jnp.float32),
                   jax.ShapeDtypeStruct((num_tiles, 1, D), jnp.float32)),
        grid=(num_tiles,),
        in_specs=[
            pl.BlockSpec(memory_space=pltpu.MemorySpace.SMEM),       # 1/temp scalar
            pl.BlockSpec((ntcrops, ncrops), lambda i: (0, 0)),       # w_stu
            pl.BlockSpec((ntcrops, 4), lambda i: (0, 0)),            # w_sgv
            pl.BlockSpec((TB, ntcrops, D), lambda i: (i, 0, 0)),     # teacher
            pl.BlockSpec((TB, ncrops, D), lambda i: (i, 0, 0)),      # student
            pl.BlockSpec((TB, 4, D), lambda i: (i, 0, 0)),           # same-global-view
            pl.BlockSpec((1, D), lambda i: (0, 0)),                  # center
        ],
        out_specs=(pl.BlockSpec((1, 1, 128), lambda i: (i, 0, 0)),
                   pl.BlockSpec((1, 1, D), lambda i: (i, 0, 0))),
        compiler_params=pltpu.CompilerParams(
            dimension_semantics=("parallel",),
            vmem_limit_bytes=32 * 1024 * 1024),
    )(inv_temp, jnp.asarray(w_stu), jnp.asarray(w_sgv),
      teacher3, student3, sgv3, center)

    # Trivial cross-tile combine kept in the wrapper so the grid axis is truly
    # parallel (megacore-shardable on v7x).
    loss = jnp.sum(loss_parts[:, 0, 0])
    batch_center = jnp.sum(center_parts[:, 0, :], axis=0, keepdims=True) / (ntcrops * B)
    new_center = center * center_momentum + batch_center * (1.0 - center_momentum)
    return loss, new_center


# -------------------- pure-JAX reference for verification --------------------
def reference(student, teacher, sgv, center, temp, *, ncrops, ntcrops,
              student_temp=0.1, center_momentum=0.9):
    s_chunks = jnp.split(student / student_temp, ncrops, axis=0)
    g_chunks = jnp.split(sgv / student_temp, 4, axis=0)
    q_all = jax.nn.softmax((teacher - center) / temp, axis=-1)
    q_chunks = jnp.split(q_all, ntcrops, axis=0)
    total, n = 0.0, 0
    for iq, q in enumerate(q_chunks):
        for v in range(ncrops):
            if v == iq:
                l1 = jnp.sum(-q * jax.nn.log_softmax(g_chunks[v], axis=-1), axis=-1)
                l2 = jnp.sum(-q * jax.nn.log_softmax(g_chunks[v + 2], axis=-1), axis=-1)
                total = total + l1.mean() + l2.mean()
                n += 2
            else:
                l = jnp.sum(-q * jax.nn.log_softmax(s_chunks[v], axis=-1), axis=-1)
                total = total + l.mean()
                n += 1
    total = total / n
    bc = jnp.sum(teacher, axis=0, keepdims=True) / teacher.shape[0]
    new_center = center * center_momentum + bc * (1.0 - center_momentum)
    return total, new_center


if __name__ == "__main__":
    # Module hyper-parameters (deterministic, in-script).
    out_dim = 128
    ncrops = 6          # e.g. 2 global + 4 local student crops
    ntcrops = 2         # teacher (global) crops; must be <= 2 given sgv has 4 chunks
    B = 16              # per-crop batch size -> 2 batch tiles of 8
    warmup_teacher_temp = 0.04
    teacher_temp = 0.07
    warmup_teacher_temp_epochs = 10
    nepochs = 20
    student_temp = 0.1
    center_momentum = 0.9
    epoch = 5

    teacher_temp_schedule = np.concatenate((
        np.linspace(warmup_teacher_temp, teacher_temp, warmup_teacher_temp_epochs),
        np.ones(nepochs - warmup_teacher_temp_epochs) * teacher_temp))

    key = jax.random.PRNGKey(0)
    k1, k2, k3 = jax.random.split(key, 3)
    student_output = jax.random.normal(k1, (ncrops * B, out_dim), dtype=jnp.float32)
    teacher_output = jax.random.normal(k2, (ntcrops * B, out_dim), dtype=jnp.float32)
    same_global_view_output = jax.random.normal(k3, (4 * B, out_dim), dtype=jnp.float32)
    center = jnp.zeros((1, out_dim), dtype=jnp.float32)  # register_buffer init

    loss, new_center = sgit_dino_loss(
        student_output, teacher_output, same_global_view_output, center, epoch,
        ncrops=ncrops, ntcrops=ntcrops, teacher_temp_schedule=teacher_temp_schedule,
        student_temp=student_temp, center_momentum=center_momentum)
    jax.block_until_ready((loss, new_center))

    ref_loss, ref_center = reference(
        student_output, teacher_output, same_global_view_output, center,
        float(teacher_temp_schedule[epoch]),
        ncrops=ncrops, ntcrops=ntcrops,
        student_temp=student_temp, center_momentum=center_momentum)

    # Loss tolerance allows for the MXU's pass-decomposed f32 contraction path.
    assert np.allclose(np.asarray(loss), np.asarray(ref_loss), rtol=1e-2, atol=1e-2), \
        (loss, ref_loss)
    assert np.allclose(np.asarray(new_center), np.asarray(ref_center),
                       rtol=1e-5, atol=1e-6), (new_center, ref_center)

    print("KERNEL_OK")
</pallas_src>

<mosaic_0001>
module attributes {stable_mosaic.version = 11 : i64} {
  func.func @kernel(%arg0: i32, %arg1: memref<1xf32, #tpu.memory_space<smem>>, %arg2: memref<2x6xf32, #tpu.memory_space<vmem>>, %arg3: memref<2x4xf32, #tpu.memory_space<vmem>>, %arg4: memref<8x2x128xf32, #tpu.memory_space<vmem>>, %arg5: memref<8x6x128xf32, #tpu.memory_space<vmem>>, %arg6: memref<8x4x128xf32, #tpu.memory_space<vmem>>, %arg7: memref<1x128xf32, #tpu.memory_space<vmem>>, %arg8: memref<1x1x128xf32, #tpu.memory_space<vmem>>, %arg9: memref<1x1x128xf32, #tpu.memory_space<vmem>>) attributes {dimension_semantics = [#tpu.dimension_semantics<parallel>], iteration_bounds = array<i64: 2>, scalar_prefetch = 0 : i64, scratch_operands = 0 : i64, tpu.core_type = #tpu.core_type<tc>, window_params = [{transform_indices = @transform_0, window_bounds = array<i64: 1>}, {pipeline_mode = #tpu.pipeline_mode<synchronous>, transform_indices = @transform_1, window_bounds = array<i64: 2, 6>}, {pipeline_mode = #tpu.pipeline_mode<synchronous>, transform_indices = @transform_2, window_bounds = array<i64: 2, 4>}, {transform_indices = @transform_3, window_bounds = array<i64: 8, 2, 128>}, {transform_indices = @transform_4, window_bounds = array<i64: 8, 6, 128>}, {transform_indices = @transform_5, window_bounds = array<i64: 8, 4, 128>}, {pipeline_mode = #tpu.pipeline_mode<synchronous>, transform_indices = @transform_6, window_bounds = array<i64: 1, 128>}, {transform_indices = @transform_7, window_bounds = array<i64: 1, 1, 128>}, {transform_indices = @transform_8, window_bounds = array<i64: 1, 1, 128>}]} {
    %c0 = arith.constant 0 : index
    %0 = memref.load %arg1[%c0] : memref<1xf32, #tpu.memory_space<smem>>
    %c0_0 = arith.constant 0 : index
    %c0_1 = arith.constant 0 : index
    %1 = vector.load %arg7[%c0_0, %c0_1] : memref<1x128xf32, #tpu.memory_space<vmem>>, vector<1x128xf32>
    %2 = vector.shape_cast %1 : vector<1x128xf32> to vector<1x1x128xf32>
    %c0_2 = arith.constant 0 : index
    %c0_3 = arith.constant 0 : index
    %c0_4 = arith.constant 0 : index
    %3 = vector.load %arg4[%c0_2, %c0_3, %c0_4] : memref<8x2x128xf32, #tpu.memory_space<vmem>>, vector<8x2x128xf32>
    %4 = vector.broadcast %2 : vector<1x1x128xf32> to vector<8x2x128xf32>
    %5 = arith.subf %3, %4 : vector<8x2x128xf32>
    %6 = vector.broadcast %0 : f32 to vector<8x2x128xf32>
    %7 = arith.mulf %5, %6 : vector<8x2x128xf32>
    %cst = arith.constant dense<0xFF800000> : vector<8x2xf32>
    %8 = vector.multi_reduction <maximumf>, %7, %cst [2] : vector<8x2x128xf32> to vector<8x2xf32>
    %9 = vector.shape_cast %8 : vector<8x2xf32> to vector<8x2x1xf32>
    %10 = vector.broadcast %9 : vector<8x2x1xf32> to vector<8x2x128xf32>
    %11 = arith.subf %7, %10 : vector<8x2x128xf32>
    %12 = math.exp %11 : vector<8x2x128xf32>
    %cst_5 = arith.constant dense<0.000000e+00> : vector<8x2xf32>
    %13 = vector.multi_reduction <add>, %12, %cst_5 [2] : vector<8x2x128xf32> to vector<8x2xf32>
    %14 = vector.shape_cast %13 : vector<8x2xf32> to vector<8x2x1xf32>
    %15 = tpu.reciprocal %14 : vector<8x2x1xf32> -> vector<8x2x1xf32>
    %16 = vector.broadcast %15 : vector<8x2x1xf32> to vector<8x2x128xf32>
    %17 = arith.mulf %12, %16 : vector<8x2x128xf32>
    %c0_6 = arith.constant 0 : index
    %c0_7 = arith.constant 0 : index
    %c0_8 = arith.constant 0 : index
    %18 = vector.load %arg5[%c0_6, %c0_7, %c0_8] : memref<8x6x128xf32, #tpu.memory_space<vmem>>, vector<8x6x128xf32>
    %cst_9 = arith.constant 1.000000e+01 : f32
    %19 = vector.broadcast %cst_9 : f32 to vector<8x6x128xf32>
    %20 = arith.mulf %18, %19 : vector<8x6x128xf32>
    %cst_10 = arith.constant dense<0xFF800000> : vector<8x6xf32>
    %21 = vector.multi_reduction <maximumf>, %20, %cst_10 [2] : vector<8x6x128xf32> to vector<8x6xf32>
    %22 = vector.shape_cast %21 : vector<8x6xf32> to vector<8x6x1xf32>
    %23 = vector.broadcast %22 : vector<8x6x1xf32> to vector<8x6x128xf32>
    %24 = arith.subf %20, %23 : vector<8x6x128xf32>
    %25 = math.exp %24 : vector<8x6x128xf32>
    %cst_11 = arith.constant dense<0.000000e+00> : vector<8x6xf32>
    %26 = vector.multi_reduction <add>, %25, %cst_11 [2] : vector<8x6x128xf32> to vector<8x6xf32>
    %27 = vector.shape_cast %26 : vector<8x6xf32> to vector<8x6x1xf32>
    %28 = math.log %27 : vector<8x6x1xf32>
    %29 = vector.broadcast %28 : vector<8x6x1xf32> to vector<8x6x128xf32>
    %30 = arith.subf %24, %29 : vector<8x6x128xf32>
    %c0_12 = arith.constant 0 : index
    %c0_13 = arith.constant 0 : index
    %c0_14 = arith.constant 0 : index
    %31 = vector.load %arg6[%c0_12, %c0_13, %c0_14] : memref<8x4x128xf32, #tpu.memory_space<vmem>>, vector<8x4x128xf32>
    %cst_15 = arith.constant 1.000000e+01 : f32
    %32 = vector.broadcast %cst_15 : f32 to vector<8x4x128xf32>
    %33 = arith.mulf %31, %32 : vector<8x4x128xf32>
    %cst_16 = arith.constant dense<0xFF800000> : vector<8x4xf32>
    %34 = vector.multi_reduction <maximumf>, %33, %cst_16 [2] : vector<8x4x128xf32> to vector<8x4xf32>
    %35 = vector.shape_cast %34 : vector<8x4xf32> to vector<8x4x1xf32>
    %36 = vector.broadcast %35 : vector<8x4x1xf32> to vector<8x4x128xf32>
    %37 = arith.subf %33, %36 : vector<8x4x128xf32>
    %38 = math.exp %37 : vector<8x4x128xf32>
    %cst_17 = arith.constant dense<0.000000e+00> : vector<8x4xf32>
    %39 = vector.multi_reduction <add>, %38, %cst_17 [2] : vector<8x4x128xf32> to vector<8x4xf32>
    %40 = vector.shape_cast %39 : vector<8x4xf32> to vector<8x4x1xf32>
    %41 = math.log %40 : vector<8x4x1xf32>
    %42 = vector.broadcast %41 : vector<8x4x1xf32> to vector<8x4x128xf32>
    %43 = arith.subf %37, %42 : vector<8x4x128xf32>
    "tpu.trace_start"() <{level = 10 : i32, message = "btd,bvd->btv"}> : () -> ()
    %cst_18 = arith.constant dense<0.000000e+00> : vector<8x2x6xf32>
    %44 = tpu.matmul %17, %30, %cst_18 {dimension_numbers = #tpu.dot_dimension_numbers<[2], [2], [1], [1], [0, 0, 0, 1, 1, 1], [0], [0]>} : vector<8x2x128xf32>, vector<8x6x128xf32>, vector<8x2x6xf32> -> vector<8x2x6xf32>
    %cst_19 = arith.constant dense<0.000000e+00> : vector<8x2x4xf32>
    %45 = tpu.matmul %17, %43, %cst_19 {dimension_numbers = #tpu.dot_dimension_numbers<[2], [2], [1], [1], [0, 0, 0, 1, 1, 1], [0], [0]>} : vector<8x2x128xf32>, vector<8x4x128xf32>, vector<8x2x4xf32> -> vector<8x2x4xf32>
    "tpu.trace_stop"() : () -> ()
    %c0_20 = arith.constant 0 : index
    %c0_21 = arith.constant 0 : index
    %46 = vector.load %arg2[%c0_20, %c0_21] : memref<2x6xf32, #tpu.memory_space<vmem>>, vector<2x6xf32>
    %47 = vector.shape_cast %46 : vector<2x6xf32> to vector<1x2x6xf32>
    %48 = vector.broadcast %47 : vector<1x2x6xf32> to vector<8x2x6xf32>
    %49 = arith.mulf %44, %48 : vector<8x2x6xf32>
    %50 = vector.shape_cast %49 : vector<8x2x6xf32> to vector<1x8x2x6xf32>
    %cst_22 = arith.constant dense<0.000000e+00> : vector<1xf32>
    %51 = vector.multi_reduction <add>, %50, %cst_22 [1, 2, 3] : vector<1x8x2x6xf32> to vector<1xf32>
    %52 = vector.shape_cast %51 : vector<1xf32> to vector<1x1x1x1xf32>
    %53 = vector.extract %52[0, 0, 0, 0] : f32 from vector<1x1x1x1xf32>
    %54 = vector.broadcast %53 : f32 to vector<1x1x1xf32>
    %c0_23 = arith.constant 0 : index
    %c0_24 = arith.constant 0 : index
    %55 = vector.load %arg3[%c0_23, %c0_24] : memref<2x4xf32, #tpu.memory_space<vmem>>, vector<2x4xf32>
    %56 = vector.shape_cast %55 : vector<2x4xf32> to vector<1x2x4xf32>
    %57 = vector.broadcast %56 : vector<1x2x4xf32> to vector<8x2x4xf32>
    %58 = arith.mulf %45, %57 : vector<8x2x4xf32>
    %59 = vector.shape_cast %58 : vector<8x2x4xf32> to vector<1x8x2x4xf32>
    %cst_25 = arith.constant dense<0.000000e+00> : vector<1xf32>
    %60 = vector.multi_reduction <add>, %59, %cst_25 [1, 2, 3] : vector<1x8x2x4xf32> to vector<1xf32>
    %61 = vector.shape_cast %60 : vector<1xf32> to vector<1x1x1x1xf32>
    %62 = vector.extract %61[0, 0, 0, 0] : f32 from vector<1x1x1x1xf32>
    %63 = vector.broadcast %62 : f32 to vector<1x1x1xf32>
    %64 = arith.addf %54, %63 : vector<1x1x1xf32>
    %cst_26 = arith.constant -0.00446428591 : f32
    %65 = vector.broadcast %cst_26 : f32 to vector<1x1x1xf32>
    %66 = arith.mulf %64, %65 : vector<1x1x1xf32>
    %67 = vector.shape_cast %66 : vector<1x1x1xf32> to vector<1x1x1xf32>
    %68 = vector.broadcast %67 : vector<1x1x1xf32> to vector<1x1x128xf32>
    %c0_27 = arith.constant 0 : index
    %c0_28 = arith.constant 0 : index
    %c0_29 = arith.constant 0 : index
    %69 = vector.load %arg8[%c0_27, %c0_28, %c0_29] : memref<1x1x128xf32, #tpu.memory_space<vmem>>, vector<1x1x128xf32>
    tpu.vector_store %arg8[%c0_27, %c0_28, %c0_29], %68 {strides = array<i32>} : memref<1x1x128xf32, #tpu.memory_space<vmem>>, vector<1x1x128xf32>,
    %c0_30 = arith.constant 0 : index
    %c0_31 = arith.constant 0 : index
    %c0_32 = arith.constant 0 : index
    %70 = vector.load %arg4[%c0_30, %c0_31, %c0_32] : memref<8x2x128xf32, #tpu.memory_space<vmem>>, vector<8x2x128xf32>
    %cst_33 = arith.constant dense<0.000000e+00> : vector<8x128xf32>
    %71 = vector.multi_reduction <add>, %70, %cst_33 [1] : vector<8x2x128xf32> to vector<8x128xf32>
    %72 = vector.shape_cast %71 : vector<8x128xf32> to vector<8x1x128xf32>
    %cst_34 = arith.constant dense<0.000000e+00> : vector<1x128xf32>
    %73 = vector.multi_reduction <add>, %72, %cst_34 [0] : vector<8x1x128xf32> to vector<1x128xf32>
    %74 = vector.shape_cast %73 : vector<1x128xf32> to vector<1x1x128xf32>
    %c0_35 = arith.constant 0 : index
    %c0_36 = arith.constant 0 : index
    %c0_37 = arith.constant 0 : index
    %75 = vector.load %arg9[%c0_35, %c0_36, %c0_37] : memref<1x1x128xf32, #tpu.memory_space<vmem>>, vector<1x1x128xf32>
    tpu.vector_store %arg9[%c0_35, %c0_36, %c0_37], %74 {strides = array<i32>} : memref<1x1x128xf32, #tpu.memory_space<vmem>>, vector<1x1x128xf32>,
    return
  }
  func.func @transform_0(%arg0: i32) -> i32 {
    %c0_i32 = arith.constant 0 : i32
    %c0_i32_0 = arith.constant 0 : i32
    return %c0_i32 : i32
  }
  func.func @transform_1(%arg0: i32) -> (i32, i32) {
    %c0_i32 = arith.constant 0 : i32
    %c0_i32_0 = arith.constant 0 : i32
    %c0_i32_1 = arith.constant 0 : i32
    return %c0_i32, %c0_i32_0 : i32, i32
  }
  func.func @transform_2(%arg0: i32) -> (i32, i32) {
    %c0_i32 = arith.constant 0 : i32
    %c0_i32_0 = arith.constant 0 : i32
    %c0_i32_1 = arith.constant 0 : i32
    return %c0_i32, %c0_i32_0 : i32, i32
  }
  func.func @transform_3(%arg0: i32) -> (i32, i32, i32) {
    %c0_i32 = arith.constant 0 : i32
    %c0_i32_0 = arith.constant 0 : i32
    %c0_i32_1 = arith.constant 0 : i32
    return %arg0, %c0_i32, %c0_i32_0 : i32, i32, i32
  }
  func.func @transform_4(%arg0: i32) -> (i32, i32, i32) {
    %c0_i32 = arith.constant 0 : i32
    %c0_i32_0 = arith.constant 0 : i32
    %c0_i32_1 = arith.constant 0 : i32
    return %arg0, %c0_i32, %c0_i32_0 : i32, i32, i32
  }
  func.func @transform_5(%arg0: i32) -> (i32, i32, i32) {
    %c0_i32 = arith.constant 0 : i32
    %c0_i32_0 = arith.constant 0 : i32
    %c0_i32_1 = arith.constant 0 : i32
    return %arg0, %c0_i32, %c0_i32_0 : i32, i32, i32
  }
  func.func @transform_6(%arg0: i32) -> (i32, i32) {
    %c0_i32 = arith.constant 0 : i32
    %c0_i32_0 = arith.constant 0 : i32
    %c0_i32_1 = arith.constant 0 : i32
    return %c0_i32, %c0_i32_0 : i32, i32
  }
  func.func @transform_7(%arg0: i32) -> (i32, i32, i32) {
    %c0_i32 = arith.constant 0 : i32
    %c0_i32_0 = arith.constant 0 : i32
    %c0_i32_1 = arith.constant 0 : i32
    return %arg0, %c0_i32, %c0_i32_0 : i32, i32, i32
  }
  func.func @transform_8(%arg0: i32) -> (i32, i32, i32) {
    %c0_i32 = arith.constant 0 : i32
    %c0_i32_0 = arith.constant 0 : i32
    %c0_i32_1 = arith.constant 0 : i32
    return %arg0, %c0_i32, %c0_i32_0 : i32, i32, i32
  }
}

</mosaic_0001>

<llo_original>
// kernel: tpu_custom_call.1
$region0: #{tpu_custom_call.1}
  #allocation0 [shape = 'u32[]', space=smem, size = 0x4, offset = 0x4, fixed_abs, tag = 'smem constant byte address 0x4 - core index']
  #allocation1 [shape = 'u32[144,128]{1,0:T(1,128)}', space=vmem, size = 0x12000, scoped, tag = 'internal scratch']
  #allocation2 [shape = 'f32[1]{0:T(128)S(6)}', space=smem, size = 0x200, scoped, tag = 'scoped memory for tpu_custom_call.1']
  %s0 = inlined_call_operand.<no memory space> [shape: f32[1], index: 0, kind: input, shape index: {}]
  %s1 = inlined_call_operand.vmem [shape: f32[2,6], index: 1, kind: input, shape index: {}]
  %s2 = inlined_call_operand.vmem [shape: f32[2,4], index: 2, kind: input, shape index: {}]
  %s3 = inlined_call_operand.vmem [shape: f32[16,2,128], index: 3, kind: input, shape index: {}]
  %s4 = inlined_call_operand.vmem [shape: f32[16,6,128], index: 4, kind: input, shape index: {}]
  %s5 = inlined_call_operand.vmem [shape: f32[16,4,128], index: 5, kind: input, shape index: {}]
  %s6 = inlined_call_operand.vmem [shape: f32[1,128], index: 6, kind: input, shape index: {}]
  %s7 = inlined_call_operand.hbm [shape: f32[2,1,128], index: 7, kind: output, shape index: {0}]
  %s8 = inlined_call_operand.hbm [shape: f32[2,1,128], index: 8, kind: output, shape index: {1}]
  %9 = xla_tuple %s7, %s8
  %s10 = sld [smem:[#allocation0]]
  $region69: #{tpu_custom_call.1} parent=0
    _
  %s12 = ssub.s32 1, %s10
  %s13 = scalar_select 0, %s12, %s10
  %14 = sst [smem:[#allocation2]] %s0
  $region1: #{tpu_custom_call.1} parent=0
    #allocation3 [shape = 'u8[1024]{0}', space=vmem, size = 0x400, scoped, tag = 'output window, operand 0']
    #allocation4 [shape = 's32[2]{0}', space=sflag, size = 0x8, scoped, tag = 'scoped memory for tpu_custom_call.1']
    #allocation5 [shape = 'u8[1024]{0}', space=vmem, size = 0x400, scoped, tag = 'output window, operand 1']
    #allocation6 [shape = 's32[2]{0}', space=sflag, size = 0x8, scoped, tag = 'scoped memory for tpu_custom_call.1']
    %15 = vsyncpa [#allocation4], 0
    %s16 = scalar_lea.sflag [#allocation4], 1
    %17 = vsyncpa %s16, 0
    %18 = vsyncpa [#allocation6], 0
    %s19 = scalar_lea.sflag [#allocation6], 1
    %20 = vsyncpa %s19, 0
    loop: start=0, step=1, limit=4
    $region2: #{tpu_custom_call.1} parent=1 // loop_pre_header
      _
    $region3: #{tpu_custom_call.1} parent=1 // loop_header
      %s22 = sphi 0, %s26
      %p23 = scmp.ge.s32.totalorder %s22, 4
      %s30 = sphi 0, %s30
      %s32 = sphi 0, %s30
      %s33 = sphi 0, %s32
      %s47 = sphi 0, %s33
      %s51 = sphi 0, %s51
      %s53 = sphi 0, %s51
      %s54 = sphi 0, %s53
      %s68 = sphi 0, %s54
      %s72 = sphi 0, %s72
      %s74 = sphi 0, %s72
      %s75 = sphi 0, %s74
      %s89 = sphi 0, %s75
      %s95 = sphi 0, %s97
      %s98 = sphi 0, %s95
      %s99 = sphi 0, %s98
      %s115 = sphi 0, %s99
      %s121 = sphi 0, %s123
      %s124 = sphi 0, %s121
      %s125 = sphi 0, %s124
      %s141 = sphi 0, %s125
      %s147 = sphi 0, %s149
      %s150 = sphi 0, %s147
      %s151 = sphi 0, %s150
      %s167 = sphi 0, %s151
      %s171 = sphi 0, %s171
      %s173 = sphi 0, %s171
      %s174 = sphi 0, %s173
      %s188 = sphi 0, %s174
      %s194 = sphi 0, %s196
      %s197 = sphi 0, %s194
      %s198 = sphi 0, %s197
      %s214 = sphi 0, %s198
      %s220 = sphi 0, %s222
      %s223 = sphi 0, %s220
      %s224 = sphi 0, %s223
      %s240 = sphi 0, %s224
    $region4: #{tpu_custom_call.1} parent=1 // loop_header_branch
      %25 = sbr.rel (%p23) target = $region8
    $region5: #{tpu_custom_call.1} parent=1 // loop_body
      %s27 = ssub.s32 %s22, 1
      %s28 = ssub.s32 %s22, 2
      %s29 = sadd.s32 %s22, 1
      %s31 = sadd.s32 %s30, 1
      %p34 = scmp.eq.s32.totalorder %s22, 1
      %p35 = scmp.ne.s32.totalorder %s30, %s32
      %p36 = scmp.eq.s32.totalorder %s22, 0
      %p37 = por %p35, %p36
      %p38 = scmp.ne.s32.totalorder %s30, %s32
      %p39 = scmp.eq.s32.totalorder %s27, 1
      %p40 = por %p38, %p39
      %p41 = scmp.ne.s32.totalorder %s32, %s33
      %p42 = scmp.eq.s32.totalorder %s27, 0
      %p43 = por %p41, %p42
      %p44 = scmp.ne.s32.totalorder %s32, %s33
      %p45 = scmp.eq.s32.totalorder %s28, 1
      %p46 = por %p44, %p45
      %p48 = scmp.ne.s32.totalorder %s33, %s47
      %p49 = scmp.eq.s32.totalorder %s28, 0
      %p50 = por %p48, %p49
      %s52 = sadd.s32 %s51, 1
      %p55 = scmp.eq.s32.totalorder %s22, 1
      %p56 = scmp.ne.s32.totalorder %s51, %s53
      %p57 = scmp.eq.s32.totalorder %s22, 0
      %p58 = por %p56, %p57
      %p59 = scmp.ne.s32.totalorder %s51, %s53
      %p60 = scmp.eq.s32.totalorder %s27, 1
      %p61 = por %p59, %p60
      %p62 = scmp.ne.s32.totalorder %s53, %s54
      %p63 = scmp.eq.s32.totalorder %s27, 0
      %p64 = por %p62, %p63
      %p65 = scmp.ne.s32.totalorder %s53, %s54
      %p66 = scmp.eq.s32.totalorder %s28, 1
      %p67 = por %p65, %p66
      %p69 = scmp.ne.s32.totalorder %s54, %s68
      %p70 = scmp.eq.s32.totalorder %s28, 0
      %p71 = por %p69, %p70
      %s73 = sadd.s32 %s72, 1
      %p76 = scmp.eq.s32.totalorder %s22, 1
      %p77 = scmp.ne.s32.totalorder %s72, %s74
      %p78 = scmp.eq.s32.totalorder %s22, 0
      %p79 = por %p77, %p78
      %p80 = scmp.ne.s32.totalorder %s72, %s74
      %p81 = scmp.eq.s32.totalorder %s27, 1
      %p82 = por %p80, %p81
      %p83 = scmp.ne.s32.totalorder %s74, %s75
      %p84 = scmp.eq.s32.totalorder %s27, 0
      %p85 = por %p83, %p84
      %p86 = scmp.ne.s32.totalorder %s74, %s75
      %p87 = scmp.eq.s32.totalorder %s28, 1
      %p88 = por %p86, %p87
      %p90 = scmp.ne.s32.totalorder %s75, %s89
      %p91 = scmp.eq.s32.totalorder %s28, 0
      %p92 = por %p90, %p91
      %s93 = ssub.s32 %s22, %s29
      %p94 = scmp.eq.s32.totalorder %s93, 0
      %s96 = sadd.s32 %s95, 1
      %s97 = scalar_select %p94, %s95, %s96
      %p100 = pneg %p94
      %p101 = scmp.eq.s32.totalorder %s22, 1
      %p102 = por %p100, %p101
      %p103 = scmp.ne.s32.totalorder %s95, %s98
      %p104 = scmp.eq.s32.totalorder %s22, 0
      %p105 = por %p103, %p104
      %p106 = scmp.ne.s32.totalorder %s95, %s98
      %p107 = scmp.eq.s32.totalorder %s27, 1
      %p108 = por %p106, %p107
      %p109 = scmp.ne.s32.totalorder %s98, %s99
      %p110 = scmp.eq.s32.totalorder %s27, 0
      %p111 = por %p109, %p110
      %p112 = scmp.ne.s32.totalorder %s98, %s99
      %p113 = scmp.eq.s32.totalorder %s28, 1
      %p114 = por %p112, %p113
      %p116 = scmp.ne.s32.totalorder %s99, %s115
      %p117 = scmp.eq.s32.totalorder %s28, 0
      %p118 = por %p116, %p117
      %s119 = ssub.s32 %s22, %s29
      %p120 = scmp.eq.s32.totalorder %s119, 0
      %s122 = sadd.s32 %s121, 1
      %s123 = scalar_select %p120, %s121, %s122
      %p126 = pneg %p120
      %p127 = scmp.eq.s32.totalorder %s22, 1
      %p128 = por %p126, %p127
      %p129 = scmp.ne.s32.totalorder %s121, %s124
      %p130 = scmp.eq.s32.totalorder %s22, 0
      %p131 = por %p129, %p130
      %p132 = scmp.ne.s32.totalorder %s121, %s124
      %p133 = scmp.eq.s32.totalorder %s27, 1
      %p134 = por %p132, %p133
      %p135 = scmp.ne.s32.totalorder %s124, %s125
      %p136 = scmp.eq.s32.totalorder %s27, 0
      %p137 = por %p135, %p136
      %p138 = scmp.ne.s32.totalorder %s124, %s125
      %p139 = scmp.eq.s32.totalorder %s28, 1
      %p140 = por %p138, %p139
      %p142 = scmp.ne.s32.totalorder %s125, %s141
      %p143 = scmp.eq.s32.totalorder %s28, 0
      %p144 = por %p142, %p143
      %s145 = ssub.s32 %s22, %s29
      %p146 = scmp.eq.s32.totalorder %s145, 0
      %s148 = sadd.s32 %s147, 1
      %s149 = scalar_select %p146, %s147, %s148
      %p152 = pneg %p146
      %p153 = scmp.eq.s32.totalorder %s22, 1
      %p154 = por %p152, %p153
      %p155 = scmp.ne.s32.totalorder %s147, %s150
      %p156 = scmp.eq.s32.totalorder %s22, 0
      %p157 = por %p155, %p156
      %p158 = scmp.ne.s32.totalorder %s147, %s150
      %p159 = scmp.eq.s32.totalorder %s27, 1
      %p160 = por %p158, %p159
      %p161 = scmp.ne.s32.totalorder %s150, %s151
      %p162 = scmp.eq.s32.totalorder %s27, 0
      %p163 = por %p161, %p162
      %p164 = scmp.ne.s32.totalorder %s150, %s151
      %p165 = scmp.eq.s32.totalorder %s28, 1
      %p166 = por %p164, %p165
      %p168 = scmp.ne.s32.totalorder %s151, %s167
      %p169 = scmp.eq.s32.totalorder %s28, 0
      %p170 = por %p168, %p169
      %s172 = sadd.s32 %s171, 1
      %p175 = scmp.eq.s32.totalorder %s22, 1
      %p176 = scmp.ne.s32.totalorder %s171, %s173
      %p177 = scmp.eq.s32.totalorder %s22, 0
      %p178 = por %p176, %p177
      %p179 = scmp.ne.s32.totalorder %s171, %s173
      %p180 = scmp.eq.s32.totalorder %s27, 1
      %p181 = por %p179, %p180
      %p182 = scmp.ne.s32.totalorder %s173, %s174
      %p183 = scmp.eq.s32.totalorder %s27, 0
      %p184 = por %p182, %p183
      %p185 = scmp.ne.s32.totalorder %s173, %s174
      %p186 = scmp.eq.s32.totalorder %s28, 1
      %p187 = por %p185, %p186
      %p189 = scmp.ne.s32.totalorder %s174, %s188
      %p190 = scmp.eq.s32.totalorder %s28, 0
      %p191 = por %p189, %p190
      %s192 = ssub.s32 %s22, %s29
      %p193 = scmp.eq.s32.totalorder %s192, 0
      %s195 = sadd.s32 %s194, 1
      %s196 = scalar_select %p193, %s194, %s195
      %p199 = pneg %p193
      %p200 = scmp.eq.s32.totalorder %s22, 1
      %p201 = por %p199, %p200
      %p202 = scmp.ne.s32.totalorder %s194, %s197
      %p203 = scmp.eq.s32.totalorder %s22, 0
      %p204 = por %p202, %p203
      %p205 = scmp.ne.s32.totalorder %s194, %s197
      %p206 = scmp.eq.s32.totalorder %s27, 1
      %p207 = por %p205, %p206
      %p208 = scmp.ne.s32.totalorder %s197, %s198
      %p209 = scmp.eq.s32.totalorder %s27, 0
      %p210 = por %p208, %p209
      %p211 = scmp.ne.s32.totalorder %s197, %s198
      %p212 = scmp.eq.s32.totalorder %s28, 1
      %p213 = por %p211, %p212
      %p215 = scmp.ne.s32.totalorder %s198, %s214
      %p216 = scmp.eq.s32.totalorder %s28, 0
      %p217 = por %p215, %p216
      %s218 = ssub.s32 %s22, %s29
      %p219 = scmp.eq.s32.totalorder %s218, 0
      %s221 = sadd.s32 %s220, 1
      %s222 = scalar_select %p219, %s220, %s221
      %p225 = pneg %p219
      %p226 = scmp.eq.s32.totalorder %s22, 1
      %p227 = por %p225, %p226
      %p228 = scmp.ne.s32.totalorder %s220, %s223
      %p229 = scmp.eq.s32.totalorder %s22, 0
      %p230 = por %p228, %p229
      %p231 = scmp.ne.s32.totalorder %s220, %s223
      %p232 = scmp.eq.s32.totalorder %s27, 1
      %p233 = por %p231, %p232
      %p234 = scmp.ne.s32.totalorder %s223, %s224
      %p235 = scmp.eq.s32.totalorder %s27, 0
      %p236 = por %p234, %p235
      %p237 = scmp.ne.s32.totalorder %s223, %s224
      %p238 = scmp.eq.s32.totalorder %s28, 1
      %p239 = por %p237, %p238
      %p241 = scmp.ne.s32.totalorder %s224, %s240
      %p242 = scmp.eq.s32.totalorder %s28, 0
      %p243 = por %p241, %p242
      %p244 = scmp.le.s32.totalorder 1, %s22
      %p245 = scmp.lt.s32.totalorder %s22, 3
      %p246 = pnand %p244, %p245
      %p247 = pneg %p246
      // Predicated region
      $region9: #{tpu_custom_call.1} parent=5 // pred_check
        _
      $region10: #{tpu_custom_call.1} parent=5 // pred_check_branch
        %249 = sbr.rel (%p246) target = $region12
      $region11: #{tpu_custom_call.1} parent=5 // pred_region
        %s250 = ssub.s32 %s22, 1
        // Predicated region
        $region13: #{tpu_custom_call.1} parent=11 // pred_check
          %p251 = pneg %p43
        $region14: #{tpu_custom_call.1} parent=11 // pred_check_branch
          %253 = sbr.rel (%p251) target = $region16
        $region15: #{tpu_custom_call.1} parent=11 // pred_region
          _
        $region16: #{tpu_custom_call.1} parent=11 // pred_fallthru
          _
        // Predicated region
        $region17: #{tpu_custom_call.1} parent=11 // pred_check
          %p254 = pneg %p64
        $region18: #{tpu_custom_call.1} parent=11 // pred_check_branch
          %256 = sbr.rel (%p254) target = $region20
        $region19: #{tpu_custom_call.1} parent=11 // pred_region
          _
        $region20: #{tpu_custom_call.1} parent=11 // pred_fallthru
          _
        // Predicated region
        $region21: #{tpu_custom_call.1} parent=11 // pred_check
          %p257 = pneg %p85
        $region22: #{tpu_custom_call.1} parent=11 // pred_check_branch
          %259 = sbr.rel (%p257) target = $region24
        $region23: #{tpu_custom_call.1} parent=11 // pred_region
          _
        $region24: #{tpu_custom_call.1} parent=11 // pred_fallthru
          _
        // Predicated region
        $region25: #{tpu_custom_call.1} parent=11 // pred_check
          %p260 = pneg %p184
        $region26: #{tpu_custom_call.1} parent=11 // pred_check_branch
          %262 = sbr.rel (%p260) target = $region28
        $region27: #{tpu_custom_call.1} parent=11 // pred_region
          _
        $region28: #{tpu_custom_call.1} parent=11 // pred_fallthru
          _
      $region12: #{tpu_custom_call.1} parent=5 // pred_fallthru
        _
      %p263 = scmp.lt.s32.totalorder %s22, 2
      // Predicated region
      $region29: #{tpu_custom_call.1} parent=5 // pred_check
        %p264 = pneg %p263
      $region30: #{tpu_custom_call.1} parent=5 // pred_check_branch
        %266 = sbr.rel (%p264) target = $region32
      $region31: #{tpu_custom_call.1} parent=5 // pred_region
        // Predicated region
        $region33: #{tpu_custom_call.1} parent=31 // pred_check
          %p267 = pneg %p105
        $region34: #{tpu_custom_call.1} parent=31 // pred_check_branch
          %269 = sbr.rel (%p267) target = $region36
        $region35: #{tpu_custom_call.1} parent=31 // pred_region
          %s270 = smul.u32 8, %s22
          %p271 = scmp.lt.s32.totalorder %s270, 15
          %s272 = scalar_select %p271, %s270, 15
          %s273 = smul.addr %s272, 2
          %s274 = scalar_lea.vmem %s3, %s273
          %s275 = smul.u32 8, %s22
        $region36: #{tpu_custom_call.1} parent=31 // pred_fallthru
          _
        // Predicated region
        $region37: #{tpu_custom_call.1} parent=31 // pred_check
          %p276 = pneg %p131
        $region38: #{tpu_custom_call.1} parent=31 // pred_check_branch
          %278 = sbr.rel (%p276) target = $region40
        $region39: #{tpu_custom_call.1} parent=31 // pred_region
          %s279 = smul.u32 8, %s22
          %p280 = scmp.lt.s32.totalorder %s279, 15
          %s281 = scalar_select %p280, %s279, 15
          %s282 = smul.addr %s281, 8
          %s283 = scalar_lea.vmem %s4, %s282
          %s284 = smul.u32 8, %s22
        $region40: #{tpu_custom_call.1} parent=31 // pred_fallthru
          _
        // Predicated region
        $region41: #{tpu_custom_call.1} parent=31 // pred_check
          %p285 = pneg %p157
        $region42: #{tpu_custom_call.1} parent=31 // pred_check_branch
          %287 = sbr.rel (%p285) target = $region44
        $region43: #{tpu_custom_call.1} parent=31 // pred_region
          %s288 = smul.u32 8, %s22
          %p289 = scmp.lt.s32.totalorder %s288, 15
          %s290 = scalar_select %p289, %s288, 15
          %s291 = smul.addr %s290, 4
          %s292 = scalar_lea.vmem %s5, %s291
          %s293 = smul.u32 8, %s22
        $region44: #{tpu_custom_call.1} parent=31 // pred_fallthru
          _
      $region32: #{tpu_custom_call.1} parent=5 // pred_fallthru
        _
      %p294 = scmp.le.s32.totalorder 1, %s22
      %p295 = scmp.lt.s32.totalorder %s22, 3
      %p296 = pnand %p294, %p295
      %p297 = pneg %p296
      // Predicated region
      $region45: #{tpu_custom_call.1} parent=5 // pred_check
        _
      $region46: #{tpu_custom_call.1} parent=5 // pred_check_branch
        %299 = sbr.rel (%p296) target = $region48
      $region47: #{tpu_custom_call.1} parent=5 // pred_region
        %s300 = ssub.s32 %s22, 1
        %p301 = pneg %p43
        %p302 = pneg %p40
        %p303 = pneg %p64
        %p304 = pneg %p61
        %p305 = pneg %p85
        %p306 = pneg %p82
        %s307 = smul.u32 8, %s27
        %p308 = scmp.lt.s32.totalorder %s307, 15
        %s309 = scalar_select %p308, %s307, 15
        %s310 = smul.addr %s309, 2
        %s311 = scalar_lea.vmem %s3, %s310
        %p312 = pneg %p111
        %p313 = pneg %p108
        %s314 = smul.u32 8, %s27
        %p315 = scmp.lt.s32.totalorder %s314, 15
        %s316 = scalar_select %p315, %s314, 15
        %s317 = smul.addr %s316, 8
        %s318 = scalar_lea.vmem %s4, %s317
        %p319 = pneg %p137
        %p320 = pneg %p134
        %s321 = smul.u32 8, %s27
        %p322 = scmp.lt.s32.totalorder %s321, 15
        %s323 = scalar_select %p322, %s321, 15
        %s324 = smul.addr %s323, 4
        %s325 = scalar_lea.vmem %s5, %s324
        %p326 = pneg %p163
        %p327 = pneg %p160
        %p328 = pneg %p184
        %p329 = pneg %p181
        %p330 = pneg %p210
        %p331 = pneg %p207
        %s332 = sand.u32 %s197, 1
        %s333 = scalar_lea.sflag [#allocation4], %s332
        %s334 = sand.u32 %s197, 1
        %s335 = scalar_lea.vmem [#allocation3], %s334
        %p336 = pneg %p236
        %p337 = pneg %p233
        %s338 = sand.u32 %s223, 1
        %s339 = scalar_lea.sflag [#allocation6], %s338
        %s340 = sand.u32 %s223, 1
        %s341 = scalar_lea.vmem [#allocation5], %s340
        %s342 = smul.u32 8, %s27
        %p343 = scmp.lt.s32.totalorder %s342, 15
        %s344 = scalar_select %p343, %s342, 15
        %s345 = smul.addr %s344, 2
        %s346 = scalar_lea.vmem %s3, %s345
        %s347 = smul.u32 8, %s27
        %s348 = smul.u32 8, %s27
        %p349 = scmp.lt.s32.totalorder %s348, 15
        %s350 = scalar_select %p349, %s348, 15
        %s351 = smul.addr %s350, 8
        %s352 = scalar_lea.vmem %s4, %s351
        %s353 = smul.u32 8, %s27
        %s354 = smul.u32 8, %s27
        %p355 = scmp.lt.s32.totalorder %s354, 15
        %s356 = scalar_select %p355, %s354, 15
        %s357 = smul.addr %s356, 4
        %s358 = scalar_lea.vmem %s5, %s357
        %s359 = smul.u32 8, %s27
        %s360 = sld [smem:[#allocation2]]
        %v361 = vld [vmem:[%s6] sm:$0x1]
        %v362 = vld [vmem:[%s346] sm:$0x3]
        %v363 = vld [vmem:[%s346 + $0x2] sm:$0x3]
        %v364 = vld [vmem:[%s346 + $0x4] sm:$0x3]
        %v365 = vld [vmem:[%s346 + $0x6] sm:$0x3]
        %v366 = vld [vmem:[%s346 + $0x8] sm:$0x3]
        %v367 = vld [vmem:[%s346 + $0xa] sm:$0x3]
        %v368 = vld [vmem:[%s346 + $0xc] sm:$0x3]
        %v369 = vld [vmem:[%s346 + $0xe] sm:$0x3]
        %v371 = vlaneseq
        %v372 = vshrl.u32 %v371, 7
        %v373 = vsub.s32 0, %v372
        %v374 = vrot.slane %v361, %v373
        %v376 = vsub.f32 %v362, %v374
        %v377 = vsub.f32 %v363, %v374
        %v378 = vsub.f32 %v364, %v374
        %v379 = vsub.f32 %v365, %v374
        %v380 = vsub.f32 %v366, %v374
        %v381 = vsub.f32 %v367, %v374
        %v382 = vsub.f32 %v368, %v374
        %v383 = vsub.f32 %v369, %v374
        %v384 = vstv %s360
        %v385 = vmul.f32 %v376, %v384
        %v386 = vmul.f32 %v377, %v384
        %v387 = vmul.f32 %v378, %v384
        %v388 = vmul.f32 %v379, %v384
        %v389 = vmul.f32 %v380, %v384
        %v390 = vmul.f32 %v381, %v384
        %v391 = vmul.f32 %v382, %v384
        %v392 = vmul.f32 %v383, %v384
        %vm393 = vcmask 1041408
        %v394 = vsel %vm393, %v385, -inf
        %395 = vmax.xlane.f32.xlu0 %v394
        %v396 = vpop.xlane.xlu0 %395
        %v397 = vsel %vm393, %v386, -inf
        %398 = vmax.xlane.f32.xlu0 %v397
        %v399 = vpop.xlane.xlu0 %398
        %v400 = vsel %vm393, %v387, -inf
        %401 = vmax.xlane.f32.xlu0 %v400
        %v402 = vpop.xlane.xlu0 %401
        %v403 = vsel %vm393, %v388, -inf
        %404 = vmax.xlane.f32.xlu0 %v403
        %v405 = vpop.xlane.xlu0 %404
        %v406 = vsel %vm393, %v389, -inf
        %407 = vmax.xlane.f32.xlu0 %v406
        %v408 = vpop.xlane.xlu0 %407
        %v409 = vsel %vm393, %v390, -inf
        %410 = vmax.xlane.f32.xlu0 %v409
        %v411 = vpop.xlane.xlu0 %410
        %v412 = vsel %vm393, %v391, -inf
        %413 = vmax.xlane.f32.xlu0 %v412
        %v414 = vpop.xlane.xlu0 %413
        %v415 = vsel %vm393, %v392, -inf
        %416 = vmax.xlane.f32.xlu0 %v415
        %v417 = vpop.xlane.xlu0 %416
        %v418 = vsub.f32 %v385, %v396
        %v419 = vsub.f32 %v386, %v399
        %v420 = vsub.f32 %v387, %v402
        %v421 = vsub.f32 %v388, %v405
        %v422 = vsub.f32 %v389, %v408
        %v423 = vsub.f32 %v390, %v411
        %v424 = vsub.f32 %v391, %v414
        %v425 = vsub.f32 %v392, %v417
        %v426 = vmul.f32 %v418, 1.442695
        %v427 = vpow.pop %v426
        %v428 = vmul.f32 %v419, 1.442695
        %v429 = vpow.pop %v428
        %v430 = vmul.f32 %v420, 1.442695
        %v431 = vpow.pop %v430
        %v432 = vmul.f32 %v421, 1.442695
        %v433 = vpow.pop %v432
        %v434 = vmul.f32 %v422, 1.442695
        %v435 = vpow.pop %v434
        %v436 = vmul.f32 %v423, 1.442695
        %v437 = vpow.pop %v436
        %v438 = vmul.f32 %v424, 1.442695
        %v439 = vpow.pop %v438
        %v440 = vmul.f32 %v425, 1.442695
        %v441 = vpow.pop %v440
        %v442 = vsel %vm393, %v427, 0.0
        %443 = vadd.xlane.f32.xlu0 %v442
        %v444 = vpop.xlane.xlu0 %443
        %v445 = vsel %vm393, %v429, 0.0
        %446 = vadd.xlane.f32.xlu0 %v445
        %v447 = vpop.xlane.xlu0 %446
        %v448 = vsel %vm393, %v431, 0.0
        %449 = vadd.xlane.f32.xlu0 %v448
        %v450 = vpop.xlane.xlu0 %449
        %v451 = vsel %vm393, %v433, 0.0
        %452 = vadd.xlane.f32.xlu0 %v451
        %v453 = vpop.xlane.xlu0 %452
        %v454 = vsel %vm393, %v435, 0.0
        %455 = vadd.xlane.f32.xlu0 %v454
        %v456 = vpop.xlane.xlu0 %455
        %v457 = vsel %vm393, %v437, 0.0
        %458 = vadd.xlane.f32.xlu0 %v457
        %v459 = vpop.xlane.xlu0 %458
        %v460 = vsel %vm393, %v439, 0.0
        %461 = vadd.xlane.f32.xlu0 %v460
        %v462 = vpop.xlane.xlu0 %461
        %v463 = vsel %vm393, %v441, 0.0
        %464 = vadd.xlane.f32.xlu0 %v463
        %v465 = vpop.xlane.xlu0 %464
        %v466 = vrcp.pop %v444
        %v467 = vrcp.pop %v447
        %v468 = vrcp.pop %v450
        %v469 = vrcp.pop %v453
        %v470 = vrcp.pop %v456
        %v471 = vrcp.pop %v459
        %v472 = vrcp.pop %v462
        %v473 = vrcp.pop %v465
        %v474 = vmul.f32 %v427, %v466
        %v475 = vmul.f32 %v429, %v467
        %v476 = vmul.f32 %v431, %v468
        %v477 = vmul.f32 %v433, %v469
        %v478 = vmul.f32 %v435, %v470
        %v479 = vmul.f32 %v437, %v471
        %v480 = vmul.f32 %v439, %v472
        %v481 = vmul.f32 %v441, %v473
        %v482 = vld [vmem:[%s352] sm:$0x3f]
        %v483 = vld [vmem:[%s352 + $0x8] sm:$0x3f]
        %v484 = vld [vmem:[%s352 + $0x10] sm:$0x3f]
        %v485 = vld [vmem:[%s352 + $0x18] sm:$0x3f]
        %v486 = vld [vmem:[%s352 + $0x20] sm:$0x3f]
        %v487 = vld [vmem:[%s352 + $0x28] sm:$0x3f]
        %v488 = vld [vmem:[%s352 + $0x30] sm:$0x3f]
        %v489 = vld [vmem:[%s352 + $0x38] sm:$0x3f]
        %v490 = vmul.f32 %v482, 10.0
        %v491 = vmul.f32 %v483, 10.0
        %v492 = vmul.f32 %v484, 10.0
        %v493 = vmul.f32 %v485, 10.0
        %v494 = vmul.f32 %v486, 10.0
        %v495 = vmul.f32 %v487, 10.0
        %v496 = vmul.f32 %v488, 10.0
        %v497 = vmul.f32 %v489, 10.0
        %vm498 = vcmask 1045504
        %v499 = vsel %vm498, %v490, -inf
        %500 = vmax.xlane.f32.xlu0 %v499
        %v501 = vpop.xlane.xlu0 %500
        %v502 = vsel %vm498, %v491, -inf
        %503 = vmax.xlane.f32.xlu0 %v502
        %v504 = vpop.xlane.xlu0 %503
        %v505 = vsel %vm498, %v492, -inf
        %506 = vmax.xlane.f32.xlu0 %v505
        %v507 = vpop.xlane.xlu0 %506
        %v508 = vsel %vm498, %v493, -inf
        %509 = vmax.xlane.f32.xlu0 %v508
        %v510 = vpop.xlane.xlu0 %509
        %v511 = vsel %vm498, %v494, -inf
        %512 = vmax.xlane.f32.xlu0 %v511
        %v513 = vpop.xlane.xlu0 %512
        %v514 = vsel %vm498, %v495, -inf
        %515 = vmax.xlane.f32.xlu0 %v514
        %v516 = vpop.xlane.xlu0 %515
        %v517 = vsel %vm498, %v496, -inf
        %518 = vmax.xlane.f32.xlu0 %v517
        %v519 = vpop.xlane.xlu0 %518
        %v520 = vsel %vm498, %v497, -inf
        %521 = vmax.xlane.f32.xlu0 %v520
        %v522 = vpop.xlane.xlu0 %521
        %v523 = vsub.f32 %v490, %v501
        %v524 = vsub.f32 %v491, %v504
        %v525 = vsub.f32 %v492, %v507
        %v526 = vsub.f32 %v493, %v510
        %v527 = vsub.f32 %v494, %v513
        %v528 = vsub.f32 %v495, %v516
        %v529 = vsub.f32 %v496, %v519
        %v530 = vsub.f32 %v497, %v522
        %v531 = vmul.f32 %v523, 1.442695
        %v532 = vpow.pop %v531
        %v533 = vmul.f32 %v524, 1.442695
        %v534 = vpow.pop %v533
        %v535 = vmul.f32 %v525, 1.442695
        %v536 = vpow.pop %v535
        %v537 = vmul.f32 %v526, 1.442695
        %v538 = vpow.pop %v537
        %v539 = vmul.f32 %v527, 1.442695
        %v540 = vpow.pop %v539
        %v541 = vmul.f32 %v528, 1.442695
        %v542 = vpow.pop %v541
        %v543 = vmul.f32 %v529, 1.442695
        %v544 = vpow.pop %v543
        %v545 = vmul.f32 %v530, 1.442695
        %v546 = vpow.pop %v545
        %v547 = vsel %vm498, %v532, 0.0
        %548 = vadd.xlane.f32.xlu0 %v547
        %v549 = vpop.xlane.xlu0 %548
        %v550 = vsel %vm498, %v534, 0.0
        %551 = vadd.xlane.f32.xlu0 %v550
        %v552 = vpop.xlane.xlu0 %551
        %v553 = vsel %vm498, %v536, 0.0
        %554 = vadd.xlane.f32.xlu0 %v553
        %v555 = vpop.xlane.xlu0 %554
        %v556 = vsel %vm498, %v538, 0.0
        %557 = vadd.xlane.f32.xlu0 %v556
        %v558 = vpop.xlane.xlu0 %557
        %v559 = vsel %vm498, %v540, 0.0
        %560 = vadd.xlane.f32.xlu0 %v559
        %v561 = vpop.xlane.xlu0 %560
        %v562 = vsel %vm498, %v542, 0.0
        %563 = vadd.xlane.f32.xlu0 %v562
        %v564 = vpop.xlane.xlu0 %563
        %v565 = vsel %vm498, %v544, 0.0
        %566 = vadd.xlane.f32.xlu0 %v565
        %v567 = vpop.xlane.xlu0 %566
        %v568 = vsel %vm498, %v546, 0.0
        %569 = vadd.xlane.f32.xlu0 %v568
        %v570 = vpop.xlane.xlu0 %569
        %v571 = vlog2.pop %v549
        %v572 = vmul.f32 %v571, 0.6931472
        %v573 = vlog2.pop %v552
        %v574 = vmul.f32 %v573, 0.6931472
        %v575 = vlog2.pop %v555
        %v576 = vmul.f32 %v575, 0.6931472
        %v577 = vlog2.pop %v558
        %v578 = vmul.f32 %v577, 0.6931472
        %v579 = vlog2.pop %v561
        %v580 = vmul.f32 %v579, 0.6931472
        %v581 = vlog2.pop %v564
        %v582 = vmul.f32 %v581, 0.6931472
        %v583 = vlog2.pop %v567
        %v584 = vmul.f32 %v583, 0.6931472
        %v585 = vlog2.pop %v570
        %v586 = vmul.f32 %v585, 0.6931472
        %v587 = vsub.f32 %v523, %v572
        %v588 = vsub.f32 %v524, %v574
        %v589 = vsub.f32 %v525, %v576
        %v590 = vsub.f32 %v526, %v578
        %v591 = vsub.f32 %v527, %v580
        %v592 = vsub.f32 %v528, %v582
        %v593 = vsub.f32 %v529, %v584
        %v594 = vsub.f32 %v530, %v586
        %v595 = vld [vmem:[%s358] sm:$0xf]
        %v596 = vld [vmem:[%s358 + $0x4] sm:$0xf]
        %v597 = vld [vmem:[%s358 + $0x8] sm:$0xf]
        %v598 = vld [vmem:[%s358 + $0xc] sm:$0xf]
        %v599 = vld [vmem:[%s358 + $0x10] sm:$0xf]
        %v600 = vld [vmem:[%s358 + $0x14] sm:$0xf]
        %v601 = vld [vmem:[%s358 + $0x18] sm:$0xf]
        %v602 = vld [vmem:[%s358 + $0x1c] sm:$0xf]
        %v603 = vmul.f32 %v595, 10.0
        %v604 = vmul.f32 %v596, 10.0
        %v605 = vmul.f32 %v597, 10.0
        %v606 = vmul.f32 %v598, 10.0
        %v607 = vmul.f32 %v599, 10.0
        %v608 = vmul.f32 %v600, 10.0
        %v609 = vmul.f32 %v601, 10.0
        %v610 = vmul.f32 %v602, 10.0
        %vm611 = vcmask 1043456
        %v612 = vsel %vm611, %v603, -inf
        %613 = vmax.xlane.f32.xlu0 %v612
        %v614 = vpop.xlane.xlu0 %613
        %v615 = vsel %vm611, %v604, -inf
        %616 = vmax.xlane.f32.xlu0 %v615
        %v617 = vpop.xlane.xlu0 %616
        %v618 = vsel %vm611, %v605, -inf
        %619 = vmax.xlane.f32.xlu0 %v618
        %v620 = vpop.xlane.xlu0 %619
        %v621 = vsel %vm611, %v606, -inf
        %622 = vmax.xlane.f32.xlu0 %v621
        %v623 = vpop.xlane.xlu0 %622
        %v624 = vsel %vm611, %v607, -inf
        %625 = vmax.xlane.f32.xlu0 %v624
        %v626 = vpop.xlane.xlu0 %625
        %v627 = vsel %vm611, %v608, -inf
        %628 = vmax.xlane.f32.xlu0 %v627
        %v629 = vpop.xlane.xlu0 %628
        %v630 = vsel %vm611, %v609, -inf
        %631 = vmax.xlane.f32.xlu0 %v630
        %v632 = vpop.xlane.xlu0 %631
        %v633 = vsel %vm611, %v610, -inf
        %634 = vmax.xlane.f32.xlu0 %v633
        %v635 = vpop.xlane.xlu0 %634
        %v636 = vsub.f32 %v603, %v614
        %v637 = vsub.f32 %v604, %v617
        %v638 = vsub.f32 %v605, %v620
        %v639 = vsub.f32 %v606, %v623
        %v640 = vsub.f32 %v607, %v626
        %v641 = vsub.f32 %v608, %v629
        %v642 = vsub.f32 %v609, %v632
        %v643 = vsub.f32 %v610, %v635
        %v644 = vmul.f32 %v636, 1.442695
        %v645 = vpow.pop %v644
        %v646 = vmul.f32 %v637, 1.442695
        %v647 = vpow.pop %v646
        %v648 = vmul.f32 %v638, 1.442695
        %v649 = vpow.pop %v648
        %v650 = vmul.f32 %v639, 1.442695
        %v651 = vpow.pop %v650
        %v652 = vmul.f32 %v640, 1.442695
        %v653 = vpow.pop %v652
        %v654 = vmul.f32 %v641, 1.442695
        %v655 = vpow.pop %v654
        %v656 = vmul.f32 %v642, 1.442695
        %v657 = vpow.pop %v656
        %v658 = vmul.f32 %v643, 1.442695
        %v659 = vpow.pop %v658
        %v660 = vsel %vm611, %v645, 0.0
        %661 = vadd.xlane.f32.xlu0 %v660
        %v662 = vpop.xlane.xlu0 %661
        %v663 = vsel %vm611, %v647, 0.0
        %664 = vadd.xlane.f32.xlu0 %v663
        %v665 = vpop.xlane.xlu0 %664
        %v666 = vsel %vm611, %v649, 0.0
        %667 = vadd.xlane.f32.xlu0 %v666
        %v668 = vpop.xlane.xlu0 %667
        %v669 = vsel %vm611, %v651, 0.0
        %670 = vadd.xlane.f32.xlu0 %v669
        %v671 = vpop.xlane.xlu0 %670
        %v672 = vsel %vm611, %v653, 0.0
        %673 = vadd.xlane.f32.xlu0 %v672
        %v674 = vpop.xlane.xlu0 %673
        %v675 = vsel %vm611, %v655, 0.0
        %676 = vadd.xlane.f32.xlu0 %v675
        %v677 = vpop.xlane.xlu0 %676
        %v678 = vsel %vm611, %v657, 0.0
        %679 = vadd.xlane.f32.xlu0 %v678
        %v680 = vpop.xlane.xlu0 %679
        %v681 = vsel %vm611, %v659, 0.0
        %682 = vadd.xlane.f32.xlu0 %v681
        %v683 = vpop.xlane.xlu0 %682
        %v684 = vlog2.pop %v662
        %v685 = vmul.f32 %v684, 0.6931472
        %v686 = vlog2.pop %v665
        %v687 = vmul.f32 %v686, 0.6931472
        %v688 = vlog2.pop %v668
        %v689 = vmul.f32 %v688, 0.6931472
        %v690 = vlog2.pop %v671
        %v691 = vmul.f32 %v690, 0.6931472
        %v692 = vlog2.pop %v674
        %v693 = vmul.f32 %v692, 0.6931472
        %v694 = vlog2.pop %v677
        %v695 = vmul.f32 %v694, 0.6931472
        %v696 = vlog2.pop %v680
        %v697 = vmul.f32 %v696, 0.6931472
        %v698 = vlog2.pop %v683
        %v699 = vmul.f32 %v698, 0.6931472
        %v700 = vsub.f32 %v636, %v685
        %v701 = vsub.f32 %v637, %v687
        %v702 = vsub.f32 %v638, %v689
        %v703 = vsub.f32 %v639, %v691
        %v704 = vsub.f32 %v640, %v693
        %v705 = vsub.f32 %v641, %v695
        %v706 = vsub.f32 %v642, %v697
        %v707 = vsub.f32 %v643, %v699
        %708 = vmatprep.subr.mxu0 0.0
        %709 = vmatpush1.xpose.msra.mxu0 %v587
        %710 = vmatprep.subr.mxu0 0.0
        %711 = vmatpush1.xpose.msra.mxu0 0.0
        %712 = vmatprep.subr.mxu0 0.0
        %713 = vmatpush1.xpose.msra.mxu0 0.0
        %714 = vmatprep.subr.mxu0 0.0
        %715 = vmatpush1.xpose.msra.mxu0 0.0
        %716 = vmatprep.subr.mxu0 0.0
        %717 = vmatpush1.xpose.msra.mxu0 0.0
        %718 = vmatprep.subr.mxu0 0.0
        %719 = vmatpush1.xpose.msra.mxu0 0.0
        %720 = vmatprep.subr.mxu0 0.0
        %721 = vmatpush1.xpose.msra.mxu0 0.0
        %722 = vmatprep.subr.mxu0 0.0
        %723 = vmatpush1.xpose.msra.mxu0 0.0
        %724 = vmatprep.subr.mxu0 0.0
        %725 = vmatpush1.xpose.msra.mxu0 0.0
        %726 = vmatprep.subr.mxu0 0.0
        %727 = vmatpush1.xpose.msra.mxu0 0.0
        %728 = vmatprep.subr.mxu0 0.0
        %729 = vmatpush1.xpose.msra.mxu0 0.0
        %730 = vmatprep.subr.mxu0 0.0
        %731 = vmatpush1.xpose.msra.mxu0 0.0
        %732 = vmatprep.subr.mxu0 0.0
        %733 = vmatpush1.xpose.msra.mxu0 0.0
        %734 = vmatprep.subr.mxu0 0.0
        %735 = vmatpush1.xpose.msra.mxu0 0.0
        %736 = vmatprep.subr.mxu0 0.0
        %737 = vmatpush1.xpose.msra.mxu0 0.0
        %738 = vmatprep.subr.mxu0 0.0
        %739 = vmatpush1.xpose.msra.mxu0 0.0
        %740 = vmatprep.subr.mxu0 0.0
        %741 = vmatpush1.xpose.msra.mxu0 0.0
        %742 = vmatprep.subr.mxu0 0.0
        %743 = vmatpush1.xpose.msra.mxu0 0.0
        %744 = vmatprep.subr.mxu0 0.0
        %745 = vmatpush1.xpose.msra.mxu0 0.0
        %746 = vmatprep.subr.mxu0 0.0
        %747 = vmatpush1.xpose.msra.mxu0 0.0
        %748 = vmatprep.subr.mxu0 0.0
        %749 = vmatpush1.xpose.msra.mxu0 0.0
        %750 = vmatprep.subr.mxu0 0.0
        %751 = vmatpush1.xpose.msra.mxu0 0.0
        %752 = vmatprep.subr.mxu0 0.0
        %753 = vmatpush1.xpose.msra.mxu0 0.0
        %754 = vmatprep.subr.mxu0 0.0
        %755 = vmatpush1.xpose.msra.mxu0 0.0
        %756 = vmatprep.subr.mxu0 0.0
        %757 = vmatpush1.xpose.msra.mxu0 0.0
        %758 = vmatprep.subr.mxu0 0.0
        %759 = vmatpush1.xpose.msra.mxu0 0.0
        %760 = vmatprep.subr.mxu0 0.0
        %761 = vmatpush1.xpose.msra.mxu0 0.0
        %762 = vmatprep.subr.mxu0 0.0
        %763 = vmatpush1.xpose.msra.mxu0 0.0
        %764 = vmatprep.subr.mxu0 0.0
        %765 = vmatpush1.xpose.msra.mxu0 0.0
        %766 = vmatprep.subr.mxu0 0.0
        %767 = vmatpush1.xpose.msra.mxu0 0.0
        %768 = vmatprep.subr.mxu0 0.0
        %769 = vmatpush1.xpose.msra.mxu0 0.0
        %770 = vmatprep.subr.mxu0 0.0
        %771 = vmatpush1.xpose.msra.mxu0 0.0
        %772 = vmatprep.mubr.f32.mxu0 0.0
        %773 = vmatmul.mubr.f32.gmra.mrb[0].mxu0 %v474
        %v774 = vpop.f32.mrb[0].mxu0
        %v775 = vadd.f32 0.0, %v774
        %v776 = vpop.f32.mrb[0].mxu0
        %777 = vdwg.mxu0
        %778 = vmatprep.subr.mxu0 0.0
        %779 = vmatpush1.xpose.msra.mxu0 %v588
        %780 = vmatprep.subr.mxu0 0.0
        %781 = vmatpush1.xpose.msra.mxu0 0.0
        %782 = vmatprep.subr.mxu0 0.0
        %783 = vmatpush1.xpose.msra.mxu0 0.0
        %784 = vmatprep.subr.mxu0 0.0
        %785 = vmatpush1.xpose.msra.mxu0 0.0
        %786 = vmatprep.subr.mxu0 0.0
        %787 = vmatpush1.xpose.msra.mxu0 0.0
        %788 = vmatprep.subr.mxu0 0.0
        %789 = vmatpush1.xpose.msra.mxu0 0.0
        %790 = vmatprep.subr.mxu0 0.0
        %791 = vmatpush1.xpose.msra.mxu0 0.0
        %792 = vmatprep.subr.mxu0 0.0
        %793 = vmatpush1.xpose.msra.mxu0 0.0
        %794 = vmatprep.subr.mxu0 0.0
        %795 = vmatpush1.xpose.msra.mxu0 0.0
        %796 = vmatprep.subr.mxu0 0.0
        %797 = vmatpush1.xpose.msra.mxu0 0.0
        %798 = vmatprep.subr.mxu0 0.0
        %799 = vmatpush1.xpose.msra.mxu0 0.0
        %800 = vmatprep.subr.mxu0 0.0
        %801 = vmatpush1.xpose.msra.mxu0 0.0
        %802 = vmatprep.subr.mxu0 0.0
        %803 = vmatpush1.xpose.msra.mxu0 0.0
        %804 = vmatprep.subr.mxu0 0.0
        %805 = vmatpush1.xpose.msra.mxu0 0.0
        %806 = vmatprep.subr.mxu0 0.0
        %807 = vmatpush1.xpose.msra.mxu0 0.0
        %808 = vmatprep.subr.mxu0 0.0
        %809 = vmatpush1.xpose.msra.mxu0 0.0
        %810 = vmatprep.subr.mxu0 0.0
        %811 = vmatpush1.xpose.msra.mxu0 0.0
        %812 = vmatprep.subr.mxu0 0.0
        %813 = vmatpush1.xpose.msra.mxu0 0.0
        %814 = vmatprep.subr.mxu0 0.0
        %815 = vmatpush1.xpose.msra.mxu0 0.0
        %816 = vmatprep.subr.mxu0 0.0
        %817 = vmatpush1.xpose.msra.mxu0 0.0
        %818 = vmatprep.subr.mxu0 0.0
        %819 = vmatpush1.xpose.msra.mxu0 0.0
        %820 = vmatprep.subr.mxu0 0.0
        %821 = vmatpush1.xpose.msra.mxu0 0.0
        %822 = vmatprep.subr.mxu0 0.0
        %823 = vmatpush1.xpose.msra.mxu0 0.0
        %824 = vmatprep.subr.mxu0 0.0
        %825 = vmatpush1.xpose.msra.mxu0 0.0
        %826 = vmatprep.subr.mxu0 0.0
        %827 = vmatpush1.xpose.msra.mxu0 0.0
        %828 = vmatprep.subr.mxu0 0.0
        %829 = vmatpush1.xpose.msra.mxu0 0.0
        %830 = vmatprep.subr.mxu0 0.0
        %831 = vmatpush1.xpose.msra.mxu0 0.0
        %832 = vmatprep.subr.mxu0 0.0
        %833 = vmatpush1.xpose.msra.mxu0 0.0
        %834 = vmatprep.subr.mxu0 0.0
        %835 = vmatpush1.xpose.msra.mxu0 0.0
        %836 = vmatprep.subr.mxu0 0.0
        %837 = vmatpush1.xpose.msra.mxu0 0.0
        %838 = vmatprep.subr.mxu0 0.0
        %839 = vmatpush1.xpose.msra.mxu0 0.0
        %840 = vmatprep.subr.mxu0 0.0
        %841 = vmatpush1.xpose.msra.mxu0 0.0
        %842 = vmatprep.mubr.f32.mxu0 0.0
        %843 = vmatmul.mubr.f32.gmra.mrb[0].mxu0 %v475
        %v844 = vpop.f32.mrb[0].mxu0
        %v845 = vadd.f32 0.0, %v844
        %v846 = vpop.f32.mrb[0].mxu0
        %847 = vdwg.mxu0
        %848 = vmatprep.subr.mxu0 0.0
        %849 = vmatpush1.xpose.msra.mxu0 %v589
        %850 = vmatprep.subr.mxu0 0.0
        %851 = vmatpush1.xpose.msra.mxu0 0.0
        %852 = vmatprep.subr.mxu0 0.0
        %853 = vmatpush1.xpose.msra.mxu0 0.0
        %854 = vmatprep.subr.mxu0 0.0
        %855 = vmatpush1.xpose.msra.mxu0 0.0
        %856 = vmatprep.subr.mxu0 0.0
        %857 = vmatpush1.xpose.msra.mxu0 0.0
        %858 = vmatprep.subr.mxu0 0.0
        %859 = vmatpush1.xpose.msra.mxu0 0.0
        %860 = vmatprep.subr.mxu0 0.0
        %861 = vmatpush1.xpose.msra.mxu0 0.0
        %862 = vmatprep.subr.mxu0 0.0
        %863 = vmatpush1.xpose.msra.mxu0 0.0
        %864 = vmatprep.subr.mxu0 0.0
        %865 = vmatpush1.xpose.msra.mxu0 0.0
        %866 = vmatprep.subr.mxu0 0.0
        %867 = vmatpush1.xpose.msra.mxu0 0.0
        %868 = vmatprep.subr.mxu0 0.0
        %869 = vmatpush1.xpose.msra.mxu0 0.0
        %870 = vmatprep.subr.mxu0 0.0
        %871 = vmatpush1.xpose.msra.mxu0 0.0
        %872 = vmatprep.subr.mxu0 0.0
        %873 = vmatpush1.xpose.msra.mxu0 0.0
        %874 = vmatprep.subr.mxu0 0.0
        %875 = vmatpush1.xpose.msra.mxu0 0.0
        %876 = vmatprep.subr.mxu0 0.0
        %877 = vmatpush1.xpose.msra.mxu0 0.0
        %878 = vmatprep.subr.mxu0 0.0
        %879 = vmatpush1.xpose.msra.mxu0 0.0
        %880 = vmatprep.subr.mxu0 0.0
        %881 = vmatpush1.xpose.msra.mxu0 0.0
        %882 = vmatprep.subr.mxu0 0.0
        %883 = vmatpush1.xpose.msra.mxu0 0.0
        %884 = vmatprep.subr.mxu0 0.0
        %885 = vmatpush1.xpose.msra.mxu0 0.0
        %886 = vmatprep.subr.mxu0 0.0
        %887 = vmatpush1.xpose.msra.mxu0 0.0
        %888 = vmatprep.subr.mxu0 0.0
        %889 = vmatpush1.xpose.msra.mxu0 0.0
        %890 = vmatprep.subr.mxu0 0.0
        %891 = vmatpush1.xpose.msra.mxu0 0.0
        %892 = vmatprep.subr.mxu0 0.0
        %893 = vmatpush1.xpose.msra.mxu0 0.0
        %894 = vmatprep.subr.mxu0 0.0
        %895 = vmatpush1.xpose.msra.mxu0 0.0
        %896 = vmatprep.subr.mxu0 0.0
        %897 = vmatpush1.xpose.msra.mxu0 0.0
        %898 = vmatprep.subr.mxu0 0.0
        %899 = vmatpush1.xpose.msra.mxu0 0.0
        %900 = vmatprep.subr.mxu0 0.0
        %901 = vmatpush1.xpose.msra.mxu0 0.0
        %902 = vmatprep.subr.mxu0 0.0
        %903 = vmatpush1.xpose.msra.mxu0 0.0
        %904 = vmatprep.subr.mxu0 0.0
        %905 = vmatpush1.xpose.msra.mxu0 0.0
        %906 = vmatprep.subr.mxu0 0.0
        %907 = vmatpush1.xpose.msra.mxu0 0.0
        %908 = vmatprep.subr.mxu0 0.0
        %909 = vmatpush1.xpose.msra.mxu0 0.0
        %910 = vmatprep.subr.mxu0 0.0
        %911 = vmatpush1.xpose.msra.mxu0 0.0
        %912 = vmatprep.mubr.f32.mxu0 0.0
        %913 = vmatmul.mubr.f32.gmra.mrb[0].mxu0 %v476
        %v914 = vpop.f32.mrb[0].mxu0
        %v915 = vadd.f32 0.0, %v914
        %v916 = vpop.f32.mrb[0].mxu0
        %917 = vdwg.mxu0
        %918 = vmatprep.subr.mxu0 0.0
        %919 = vmatpush1.xpose.msra.mxu0 %v590
        %920 = vmatprep.subr.mxu0 0.0
        %921 = vmatpush1.xpose.msra.mxu0 0.0
        %922 = vmatprep.subr.mxu0 0.0
        %923 = vmatpush1.xpose.msra.mxu0 0.0
        %924 = vmatprep.subr.mxu0 0.0
        %925 = vmatpush1.xpose.msra.mxu0 0.0
        %926 = vmatprep.subr.mxu0 0.0
        %927 = vmatpush1.xpose.msra.mxu0 0.0
        %928 = vmatprep.subr.mxu0 0.0
        %929 = vmatpush1.xpose.msra.mxu0 0.0
        %930 = vmatprep.subr.mxu0 0.0
        %931 = vmatpush1.xpose.msra.mxu0 0.0
        %932 = vmatprep.subr.mxu0 0.0
        %933 = vmatpush1.xpose.msra.mxu0 0.0
        %934 = vmatprep.subr.mxu0 0.0
        %935 = vmatpush1.xpose.msra.mxu0 0.0
        %936 = vmatprep.subr.mxu0 0.0
        %937 = vmatpush1.xpose.msra.mxu0 0.0
        %938 = vmatprep.subr.mxu0 0.0
        %939 = vmatpush1.xpose.msra.mxu0 0.0
        %940 = vmatprep.subr.mxu0 0.0
        %941 = vmatpush1.xpose.msra.mxu0 0.0
        %942 = vmatprep.subr.mxu0 0.0
        %943 = vmatpush1.xpose.msra.mxu0 0.0
        %944 = vmatprep.subr.mxu0 0.0
        %945 = vmatpush1.xpose.msra.mxu0 0.0
        %946 = vmatprep.subr.mxu0 0.0
        %947 = vmatpush1.xpose.msra.mxu0 0.0
        %948 = vmatprep.subr.mxu0 0.0
        %949 = vmatpush1.xpose.msra.mxu0 0.0
        %950 = vmatprep.subr.mxu0 0.0
        %951 = vmatpush1.xpose.msra.mxu0 0.0
        %952 = vmatprep.subr.mxu0 0.0
        %953 = vmatpush1.xpose.msra.mxu0 0.0
        %954 = vmatprep.subr.mxu0 0.0
        %955 = vmatpush1.xpose.msra.mxu0 0.0
        %956 = vmatprep.subr.mxu0 0.0
        %957 = vmatpush1.xpose.msra.mxu0 0.0
        %958 = vmatprep.subr.mxu0 0.0
        %959 = vmatpush1.xpose.msra.mxu0 0.0
        %960 = vmatprep.subr.mxu0 0.0
        %961 = vmatpush1.xpose.msra.mxu0 0.0
        %962 = vmatprep.subr.mxu0 0.0
        %963 = vmatpush1.xpose.msra.mxu0 0.0
        %964 = vmatprep.subr.mxu0 0.0
        %965 = vmatpush1.xpose.msra.mxu0 0.0
        %966 = vmatprep.subr.mxu0 0.0
        %967 = vmatpush1.xpose.msra.mxu0 0.0
        %968 = vmatprep.subr.mxu0 0.0
        %969 = vmatpush1.xpose.msra.mxu0 0.0
        %970 = vmatprep.subr.mxu0 0.0
        %971 = vmatpush1.xpose.msra.mxu0 0.0
        %972 = vmatprep.subr.mxu0 0.0
        %973 = vmatpush1.xpose.msra.mxu0 0.0
        %974 = vmatprep.subr.mxu0 0.0
        %975 = vmatpush1.xpose.msra.mxu0 0.0
        %976 = vmatprep.subr.mxu0 0.0
        %977 = vmatpush1.xpose.msra.mxu0 0.0
        %978 = vmatprep.subr.mxu0 0.0
        %979 = vmatpush1.xpose.msra.mxu0 0.0
        %980 = vmatprep.subr.mxu0 0.0
        %981 = vmatpush1.xpose.msra.mxu0 0.0
        %982 = vmatprep.mubr.f32.mxu0 0.0
        %983 = vmatmul.mubr.f32.gmra.mrb[0].mxu0 %v477
        %v984 = vpop.f32.mrb[0].mxu0
        %v985 = vadd.f32 0.0, %v984
        %v986 = vpop.f32.mrb[0].mxu0
        %987 = vdwg.mxu0
        %988 = vmatprep.subr.mxu0 0.0
        %989 = vmatpush1.xpose.msra.mxu0 %v591
        %990 = vmatprep.subr.mxu0 0.0
        %991 = vmatpush1.xpose.msra.mxu0 0.0
        %992 = vmatprep.subr.mxu0 0.0
        %993 = vmatpush1.xpose.msra.mxu0 0.0
        %994 = vmatprep.subr.mxu0 0.0
        %995 = vmatpush1.xpose.msra.mxu0 0.0
        %996 = vmatprep.subr.mxu0 0.0
        %997 = vmatpush1.xpose.msra.mxu0 0.0
        %998 = vmatprep.subr.mxu0 0.0
        %999 = vmatpush1.xpose.msra.mxu0 0.0
        %1000 = vmatprep.subr.mxu0 0.0
        %1001 = vmatpush1.xpose.msra.mxu0 0.0
        %1002 = vmatprep.subr.mxu0 0.0
        %1003 = vmatpush1.xpose.msra.mxu0 0.0
        %1004 = vmatprep.subr.mxu0 0.0
        %1005 = vmatpush1.xpose.msra.mxu0 0.0
        %1006 = vmatprep.subr.mxu0 0.0
        %1007 = vmatpush1.xpose.msra.mxu0 0.0
        %1008 = vmatprep.subr.mxu0 0.0
        %1009 = vmatpush1.xpose.msra.mxu0 0.0
        %1010 = vmatprep.subr.mxu0 0.0
        %1011 = vmatpush1.xpose.msra.mxu0 0.0
        %1012 = vmatprep.subr.mxu0 0.0
        %1013 = vmatpush1.xpose.msra.mxu0 0.0
        %1014 = vmatprep.subr.mxu0 0.0
        %1015 = vmatpush1.xpose.msra.mxu0 0.0
        %1016 = vmatprep.subr.mxu0 0.0
        %1017 = vmatpush1.xpose.msra.mxu0 0.0
        %1018 = vmatprep.subr.mxu0 0.0
        %1019 = vmatpush1.xpose.msra.mxu0 0.0
        %1020 = vmatprep.subr.mxu0 0.0
        %1021 = vmatpush1.xpose.msra.mxu0 0.0
        %1022 = vmatprep.subr.mxu0 0.0
        %1023 = vmatpush1.xpose.msra.mxu0 0.0
        %1024 = vmatprep.subr.mxu0 0.0
        %1025 = vmatpush1.xpose.msra.mxu0 0.0
        %1026 = vmatprep.subr.mxu0 0.0
        %1027 = vmatpush1.xpose.msra.mxu0 0.0
        %1028 = vmatprep.subr.mxu0 0.0
        %1029 = vmatpush1.xpose.msra.mxu0 0.0
        %1030 = vmatprep.subr.mxu0 0.0
        %1031 = vmatpush1.xpose.msra.mxu0 0.0
        %1032 = vmatprep.subr.mxu0 0.0
        %1033 = vmatpush1.xpose.msra.mxu0 0.0
        %1034 = vmatprep.subr.mxu0 0.0
        %1035 = vmatpush1.xpose.msra.mxu0 0.0
        %1036 = vmatprep.subr.mxu0 0.0
        %1037 = vmatpush1.xpose.msra.mxu0 0.0
        %1038 = vmatprep.subr.mxu0 0.0
        %1039 = vmatpush1.xpose.msra.mxu0 0.0
        %1040 = vmatprep.subr.mxu0 0.0
        %1041 = vmatpush1.xpose.msra.mxu0 0.0
        %1042 = vmatprep.subr.mxu0 0.0
        %1043 = vmatpush1.xpose.msra.mxu0 0.0
        %1044 = vmatprep.subr.mxu0 0.0
        %1045 = vmatpush1.xpose.msra.mxu0 0.0
        %1046 = vmatprep.subr.mxu0 0.0
        %1047 = vmatpush1.xpose.msra.mxu0 0.0
        %1048 = vmatprep.subr.mxu0 0.0
        %1049 = vmatpush1.xpose.msra.mxu0 0.0
        %1050 = vmatprep.subr.mxu0 0.0
        %1051 = vmatpush1.xpose.msra.mxu0 0.0
        %1052 = vmatprep.mubr.f32.mxu0 0.0
        %1053 = vmatmul.mubr.f32.gmra.mrb[0].mxu0 %v478
        %v1054 = vpop.f32.mrb[0].mxu0
        %v1055 = vadd.f32 0.0, %v1054
        %v1056 = vpop.f32.mrb[0].mxu0
        %1057 = vdwg.mxu0
        %1058 = vmatprep.subr.mxu0 0.0
        %1059 = vmatpush1.xpose.msra.mxu0 %v592
        %1060 = vmatprep.subr.mxu0 0.0
        %1061 = vmatpush1.xpose.msra.mxu0 0.0
        %1062 = vmatprep.subr.mxu0 0.0
        %1063 = vmatpush1.xpose.msra.mxu0 0.0
        %1064 = vmatprep.subr.mxu0 0.0
        %1065 = vmatpush1.xpose.msra.mxu0 0.0
        %1066 = vmatprep.subr.mxu0 0.0
        %1067 = vmatpush1.xpose.msra.mxu0 0.0
        %1068 = vmatprep.subr.mxu0 0.0
        %1069 = vmatpush1.xpose.msra.mxu0 0.0
        %1070 = vmatprep.subr.mxu0 0.0
        %1071 = vmatpush1.xpose.msra.mxu0 0.0
        %1072 = vmatprep.subr.mxu0 0.0
        %1073 = vmatpush1.xpose.msra.mxu0 0.0
        %1074 = vmatprep.subr.mxu0 0.0
        %1075 = vmatpush1.xpose.msra.mxu0 0.0
        %1076 = vmatprep.subr.mxu0 0.0
        %1077 = vmatpush1.xpose.msra.mxu0 0.0
        %1078 = vmatprep.subr.mxu0 0.0
        %1079 = vmatpush1.xpose.msra.mxu0 0.0
        %1080 = vmatprep.subr.mxu0 0.0
        %1081 = vmatpush1.xpose.msra.mxu0 0.0
        %1082 = vmatprep.subr.mxu0 0.0
        %1083 = vmatpush1.xpose.msra.mxu0 0.0
        %1084 = vmatprep.subr.mxu0 0.0
        %1085 = vmatpush1.xpose.msra.mxu0 0.0
        %1086 = vmatprep.subr.mxu0 0.0
        %1087 = vmatpush1.xpose.msra.mxu0 0.0
        %1088 = vmatprep.subr.mxu0 0.0
        %1089 = vmatpush1.xpose.msra.mxu0 0.0
        %1090 = vmatprep.subr.mxu0 0.0
        %1091 = vmatpush1.xpose.msra.mxu0 0.0
        %1092 = vmatprep.subr.mxu0 0.0
        %1093 = vmatpush1.xpose.msra.mxu0 0.0
        %1094 = vmatprep.subr.mxu0 0.0
        %1095 = vmatpush1.xpose.msra.mxu0 0.0
        %1096 = vmatprep.subr.mxu0 0.0
        %1097 = vmatpush1.xpose.msra.mxu0 0.0
        %1098 = vmatprep.subr.mxu0 0.0
        %1099 = vmatpush1.xpose.msra.mxu0 0.0
        %1100 = vmatprep.subr.mxu0 0.0
        %1101 = vmatpush1.xpose.msra.mxu0 0.0
        %1102 = vmatprep.subr.mxu0 0.0
        %1103 = vmatpush1.xpose.msra.mxu0 0.0
        %1104 = vmatprep.subr.mxu0 0.0
        %1105 = vmatpush1.xpose.msra.mxu0 0.0
        %1106 = vmatprep.subr.mxu0 0.0
        %1107 = vmatpush1.xpose.msra.mxu0 0.0
        %1108 = vmatprep.subr.mxu0 0.0
        %1109 = vmatpush1.xpose.msra.mxu0 0.0
        %1110 = vmatprep.subr.mxu0 0.0
        %1111 = vmatpush1.xpose.msra.mxu0 0.0
        %1112 = vmatprep.subr.mxu0 0.0
        %1113 = vmatpush1.xpose.msra.mxu0 0.0
        %1114 = vmatprep.subr.mxu0 0.0
        %1115 = vmatpush1.xpose.msra.mxu0 0.0
        %1116 = vmatprep.subr.mxu0 0.0
        %1117 = vmatpush1.xpose.msra.mxu0 0.0
        %1118 = vmatprep.subr.mxu0 0.0
        %1119 = vmatpush1.xpose.msra.mxu0 0.0
        %1120 = vmatprep.subr.mxu0 0.0
        %1121 = vmatpush1.xpose.msra.mxu0 0.0
        %1122 = vmatprep.mubr.f32.mxu0 0.0
        %1123 = vmatmul.mubr.f32.gmra.mrb[0].mxu0 %v479
        %v1124 = vpop.f32.mrb[0].mxu0
        %v1125 = vadd.f32 0.0, %v1124
        %v1126 = vpop.f32.mrb[0].mxu0
        %1127 = vdwg.mxu0
        %1128 = vmatprep.subr.mxu0 0.0
        %1129 = vmatpush1.xpose.msra.mxu0 %v593
        %1130 = vmatprep.subr.mxu0 0.0
        %1131 = vmatpush1.xpose.msra.mxu0 0.0
        %1132 = vmatprep.subr.mxu0 0.0
        %1133 = vmatpush1.xpose.msra.mxu0 0.0
        %1134 = vmatprep.subr.mxu0 0.0
        %1135 = vmatpush1.xpose.msra.mxu0 0.0
        %1136 = vmatprep.subr.mxu0 0.0
        %1137 = vmatpush1.xpose.msra.mxu0 0.0
        %1138 = vmatprep.subr.mxu0 0.0
        %1139 = vmatpush1.xpose.msra.mxu0 0.0
        %1140 = vmatprep.subr.mxu0 0.0
        %1141 = vmatpush1.xpose.msra.mxu0 0.0
        %1142 = vmatprep.subr.mxu0 0.0
        %1143 = vmatpush1.xpose.msra.mxu0 0.0
        %1144 = vmatprep.subr.mxu0 0.0
        %1145 = vmatpush1.xpose.msra.mxu0 0.0
        %1146 = vmatprep.subr.mxu0 0.0
        %1147 = vmatpush1.xpose.msra.mxu0 0.0
        %1148 = vmatprep.subr.mxu0 0.0
        %1149 = vmatpush1.xpose.msra.mxu0 0.0
        %1150 = vmatprep.subr.mxu0 0.0
        %1151 = vmatpush1.xpose.msra.mxu0 0.0
        %1152 = vmatprep.subr.mxu0 0.0
        %1153 = vmatpush1.xpose.msra.mxu0 0.0
        %1154 = vmatprep.subr.mxu0 0.0
        %1155 = vmatpush1.xpose.msra.mxu0 0.0
        %1156 = vmatprep.subr.mxu0 0.0
        %1157 = vmatpush1.xpose.msra.mxu0 0.0
        %1158 = vmatprep.subr.mxu0 0.0
        %1159 = vmatpush1.xpose.msra.mxu0 0.0
        %1160 = vmatprep.subr.mxu0 0.0
        %1161 = vmatpush1.xpose.msra.mxu0 0.0
        %1162 = vmatprep.subr.mxu0 0.0
        %1163 = vmatpush1.xpose.msra.mxu0 0.0
        %1164 = vmatprep.subr.mxu0 0.0
        %1165 = vmatpush1.xpose.msra.mxu0 0.0
        %1166 = vmatprep.subr.mxu0 0.0
        %1167 = vmatpush1.xpose.msra.mxu0 0.0
        %1168 = vmatprep.subr.mxu0 0.0
        %1169 = vmatpush1.xpose.msra.mxu0 0.0
        %1170 = vmatprep.subr.mxu0 0.0
        %1171 = vmatpush1.xpose.msra.mxu0 0.0
        %1172 = vmatprep.subr.mxu0 0.0
        %1173 = vmatpush1.xpose.msra.mxu0 0.0
        %1174 = vmatprep.subr.mxu0 0.0
        %1175 = vmatpush1.xpose.msra.mxu0 0.0
        %1176 = vmatprep.subr.mxu0 0.0
        %1177 = vmatpush1.xpose.msra.mxu0 0.0
        %1178 = vmatprep.subr.mxu0 0.0
        %1179 = vmatpush1.xpose.msra.mxu0 0.0
        %1180 = vmatprep.subr.mxu0 0.0
        %1181 = vmatpush1.xpose.msra.mxu0 0.0
        %1182 = vmatprep.subr.mxu0 0.0
        %1183 = vmatpush1.xpose.msra.mxu0 0.0
        %1184 = vmatprep.subr.mxu0 0.0
        %1185 = vmatpush1.xpose.msra.mxu0 0.0
        %1186 = vmatprep.subr.mxu0 0.0
        %1187 = vmatpush1.xpose.msra.mxu0 0.0
        %1188 = vmatprep.subr.mxu0 0.0
        %1189 = vmatpush1.xpose.msra.mxu0 0.0
        %1190 = vmatprep.subr.mxu0 0.0
        %1191 = vmatpush1.xpose.msra.mxu0 0.0
        %1192 = vmatprep.mubr.f32.mxu0 0.0
        %1193 = vmatmul.mubr.f32.gmra.mrb[0].mxu0 %v480
        %v1194 = vpop.f32.mrb[0].mxu0
        %v1195 = vadd.f32 0.0, %v1194
        %v1196 = vpop.f32.mrb[0].mxu0
        %1197 = vdwg.mxu0
        %1198 = vmatprep.subr.mxu0 0.0
        %1199 = vmatpush1.xpose.msra.mxu0 %v594
        %1200 = vmatprep.subr.mxu0 0.0
        %1201 = vmatpush1.xpose.msra.mxu0 0.0
        %1202 = vmatprep.subr.mxu0 0.0
        %1203 = vmatpush1.xpose.msra.mxu0 0.0
        %1204 = vmatprep.subr.mxu0 0.0
        %1205 = vmatpush1.xpose.msra.mxu0 0.0
        %1206 = vmatprep.subr.mxu0 0.0
        %1207 = vmatpush1.xpose.msra.mxu0 0.0
        %1208 = vmatprep.subr.mxu0 0.0
        %1209 = vmatpush1.xpose.msra.mxu0 0.0
        %1210 = vmatprep.subr.mxu0 0.0
        %1211 = vmatpush1.xpose.msra.mxu0 0.0
        %1212 = vmatprep.subr.mxu0 0.0
        %1213 = vmatpush1.xpose.msra.mxu0 0.0
        %1214 = vmatprep.subr.mxu0 0.0
        %1215 = vmatpush1.xpose.msra.mxu0 0.0
        %1216 = vmatprep.subr.mxu0 0.0
        %1217 = vmatpush1.xpose.msra.mxu0 0.0
        %1218 = vmatprep.subr.mxu0 0.0
        %1219 = vmatpush1.xpose.msra.mxu0 0.0
        %1220 = vmatprep.subr.mxu0 0.0
        %1221 = vmatpush1.xpose.msra.mxu0 0.0
        %1222 = vmatprep.subr.mxu0 0.0
        %1223 = vmatpush1.xpose.msra.mxu0 0.0
        %1224 = vmatprep.subr.mxu0 0.0
        %1225 = vmatpush1.xpose.msra.mxu0 0.0
        %1226 = vmatprep.subr.mxu0 0.0
        %1227 = vmatpush1.xpose.msra.mxu0 0.0
        %1228 = vmatprep.subr.mxu0 0.0
        %1229 = vmatpush1.xpose.msra.mxu0 0.0
        %1230 = vmatprep.subr.mxu0 0.0
        %1231 = vmatpush1.xpose.msra.mxu0 0.0
        %1232 = vmatprep.subr.mxu0 0.0
        %1233 = vmatpush1.xpose.msra.mxu0 0.0
        %1234 = vmatprep.subr.mxu0 0.0
        %1235 = vmatpush1.xpose.msra.mxu0 0.0
        %1236 = vmatprep.subr.mxu0 0.0
        %1237 = vmatpush1.xpose.msra.mxu0 0.0
        %1238 = vmatprep.subr.mxu0 0.0
        %1239 = vmatpush1.xpose.msra.mxu0 0.0
        %1240 = vmatprep.subr.mxu0 0.0
        %1241 = vmatpush1.xpose.msra.mxu0 0.0
        %1242 = vmatprep.subr.mxu0 0.0
        %1243 = vmatpush1.xpose.msra.mxu0 0.0
        %1244 = vmatprep.subr.mxu0 0.0
        %1245 = vmatpush1.xpose.msra.mxu0 0.0
        %1246 = vmatprep.subr.mxu0 0.0
        %1247 = vmatpush1.xpose.msra.mxu0 0.0
        %1248 = vmatprep.subr.mxu0 0.0
        %1249 = vmatpush1.xpose.msra.mxu0 0.0
        %1250 = vmatprep.subr.mxu0 0.0
        %1251 = vmatpush1.xpose.msra.mxu0 0.0
        %1252 = vmatprep.subr.mxu0 0.0
        %1253 = vmatpush1.xpose.msra.mxu0 0.0
        %1254 = vmatprep.subr.mxu0 0.0
        %1255 = vmatpush1.xpose.msra.mxu0 0.0
        %1256 = vmatprep.subr.mxu0 0.0
        %1257 = vmatpush1.xpose.msra.mxu0 0.0
        %1258 = vmatprep.subr.mxu0 0.0
        %1259 = vmatpush1.xpose.msra.mxu0 0.0
        %1260 = vmatprep.subr.mxu0 0.0
        %1261 = vmatpush1.xpose.msra.mxu0 0.0
        %1262 = vmatprep.mubr.f32.mxu0 0.0
        %1263 = vmatmul.mubr.f32.gmra.mrb[0].mxu0 %v481
        %v1264 = vpop.f32.mrb[0].mxu0
        %v1265 = vadd.f32 0.0, %v1264
        %v1266 = vpop.f32.mrb[0].mxu0
        %1267 = vdwg.mxu0
        %1268 = vmatprep.subr.mxu0 0.0
        %1269 = vmatpush1.xpose.msra.mxu0 %v700
        %1270 = vmatprep.subr.mxu0 0.0
        %1271 = vmatpush1.xpose.msra.mxu0 0.0
        %1272 = vmatprep.subr.mxu0 0.0
        %1273 = vmatpush1.xpose.msra.mxu0 0.0
        %1274 = vmatprep.subr.mxu0 0.0
        %1275 = vmatpush1.xpose.msra.mxu0 0.0
        %1276 = vmatprep.subr.mxu0 0.0
        %1277 = vmatpush1.xpose.msra.mxu0 0.0
        %1278 = vmatprep.subr.mxu0 0.0
        %1279 = vmatpush1.xpose.msra.mxu0 0.0
        %1280 = vmatprep.subr.mxu0 0.0
        %1281 = vmatpush1.xpose.msra.mxu0 0.0
        %1282 = vmatprep.subr.mxu0 0.0
        %1283 = vmatpush1.xpose.msra.mxu0 0.0
        %1284 = vmatprep.subr.mxu0 0.0
        %1285 = vmatpush1.xpose.msra.mxu0 0.0
        %1286 = vmatprep.subr.mxu0 0.0
        %1287 = vmatpush1.xpose.msra.mxu0 0.0
        %1288 = vmatprep.subr.mxu0 0.0
        %1289 = vmatpush1.xpose.msra.mxu0 0.0
        %1290 = vmatprep.subr.mxu0 0.0
        %1291 = vmatpush1.xpose.msra.mxu0 0.0
        %1292 = vmatprep.subr.mxu0 0.0
        %1293 = vmatpush1.xpose.msra.mxu0 0.0
        %1294 = vmatprep.subr.mxu0 0.0
        %1295 = vmatpush1.xpose.msra.mxu0 0.0
        %1296 = vmatprep.subr.mxu0 0.0
        %1297 = vmatpush1.xpose.msra.mxu0 0.0
        %1298 = vmatprep.subr.mxu0 0.0
        %1299 = vmatpush1.xpose.msra.mxu0 0.0
        %1300 = vmatprep.subr.mxu0 0.0
        %1301 = vmatpush1.xpose.msra.mxu0 0.0
        %1302 = vmatprep.subr.mxu0 0.0
        %1303 = vmatpush1.xpose.msra.mxu0 0.0
        %1304 = vmatprep.subr.mxu0 0.0
        %1305 = vmatpush1.xpose.msra.mxu0 0.0
        %1306 = vmatprep.subr.mxu0 0.0
        %1307 = vmatpush1.xpose.msra.mxu0 0.0
        %1308 = vmatprep.subr.mxu0 0.0
        %1309 = vmatpush1.xpose.msra.mxu0 0.0
        %1310 = vmatprep.subr.mxu0 0.0
        %1311 = vmatpush1.xpose.msra.mxu0 0.0
        %1312 = vmatprep.subr.mxu0 0.0
        %1313 = vmatpush1.xpose.msra.mxu0 0.0
        %1314 = vmatprep.subr.mxu0 0.0
        %1315 = vmatpush1.xpose.msra.mxu0 0.0
        %1316 = vmatprep.subr.mxu0 0.0
        %1317 = vmatpush1.xpose.msra.mxu0 0.0
        %1318 = vmatprep.subr.mxu0 0.0
        %1319 = vmatpush1.xpose.msra.mxu0 0.0
        %1320 = vmatprep.subr.mxu0 0.0
        %1321 = vmatpush1.xpose.msra.mxu0 0.0
        %1322 = vmatprep.subr.mxu0 0.0
        %1323 = vmatpush1.xpose.msra.mxu0 0.0
        %1324 = vmatprep.subr.mxu0 0.0
        %1325 = vmatpush1.xpose.msra.mxu0 0.0
        %1326 = vmatprep.subr.mxu0 0.0
        %1327 = vmatpush1.xpose.msra.mxu0 0.0
        %1328 = vmatprep.subr.mxu0 0.0
        %1329 = vmatpush1.xpose.msra.mxu0 0.0
        %1330 = vmatprep.subr.mxu0 0.0
        %1331 = vmatpush1.xpose.msra.mxu0 0.0
        %1332 = vmatprep.mubr.f32.mxu0 0.0
        %1333 = vmatmul.mubr.f32.gmra.mrb[0].mxu0 %v474
        %v1334 = vpop.f32.mrb[0].mxu0
        %v1335 = vadd.f32 0.0, %v1334
        %v1336 = vpop.f32.mrb[0].mxu0
        %1337 = vdwg.mxu0
        %1338 = vmatprep.subr.mxu0 0.0
        %1339 = vmatpush1.xpose.msra.mxu0 %v701
        %1340 = vmatprep.subr.mxu0 0.0
        %1341 = vmatpush1.xpose.msra.mxu0 0.0
        %1342 = vmatprep.subr.mxu0 0.0
        %1343 = vmatpush1.xpose.msra.mxu0 0.0
        %1344 = vmatprep.subr.mxu0 0.0
        %1345 = vmatpush1.xpose.msra.mxu0 0.0
        %1346 = vmatprep.subr.mxu0 0.0
        %1347 = vmatpush1.xpose.msra.mxu0 0.0
        %1348 = vmatprep.subr.mxu0 0.0
        %1349 = vmatpush1.xpose.msra.mxu0 0.0
        %1350 = vmatprep.subr.mxu0 0.0
        %1351 = vmatpush1.xpose.msra.mxu0 0.0
        %1352 = vmatprep.subr.mxu0 0.0
        %1353 = vmatpush1.xpose.msra.mxu0 0.0
        %1354 = vmatprep.subr.mxu0 0.0
        %1355 = vmatpush1.xpose.msra.mxu0 0.0
        %1356 = vmatprep.subr.mxu0 0.0
        %1357 = vmatpush1.xpose.msra.mxu0 0.0
        %1358 = vmatprep.subr.mxu0 0.0
        %1359 = vmatpush1.xpose.msra.mxu0 0.0
        %1360 = vmatprep.subr.mxu0 0.0
        %1361 = vmatpush1.xpose.msra.mxu0 0.0
        %1362 = vmatprep.subr.mxu0 0.0
        %1363 = vmatpush1.xpose.msra.mxu0 0.0
        %1364 = vmatprep.subr.mxu0 0.0
        %1365 = vmatpush1.xpose.msra.mxu0 0.0
        %1366 = vmatprep.subr.mxu0 0.0
        %1367 = vmatpush1.xpose.msra.mxu0 0.0
        %1368 = vmatprep.subr.mxu0 0.0
        %1369 = vmatpush1.xpose.msra.mxu0 0.0
        %1370 = vmatprep.subr.mxu0 0.0
        %1371 = vmatpush1.xpose.msra.mxu0 0.0
        %1372 = vmatprep.subr.mxu0 0.0
        %1373 = vmatpush1.xpose.msra.mxu0 0.0
        %1374 = vmatprep.subr.mxu0 0.0
        %1375 = vmatpush1.xpose.msra.mxu0 0.0
        %1376 = vmatprep.subr.mxu0 0.0
        %1377 = vmatpush1.xpose.msra.mxu0 0.0
        %1378 = vmatprep.subr.mxu0 0.0
        %1379 = vmatpush1.xpose.msra.mxu0 0.0
        %1380 = vmatprep.subr.mxu0 0.0
        %1381 = vmatpush1.xpose.msra.mxu0 0.0
        %1382 = vmatprep.subr.mxu0 0.0
        %1383 = vmatpush1.xpose.msra.mxu0 0.0
        %1384 = vmatprep.subr.mxu0 0.0
        %1385 = vmatpush1.xpose.msra.mxu0 0.0
        %1386 = vmatprep.subr.mxu0 0.0
        %1387 = vmatpush1.xpose.msra.mxu0 0.0
        %1388 = vmatprep.subr.mxu0 0.0
        %1389 = vmatpush1.xpose.msra.mxu0 0.0
        %1390 = vmatprep.subr.mxu0 0.0
        %1391 = vmatpush1.xpose.msra.mxu0 0.0
        %1392 = vmatprep.subr.mxu0 0.0
        %1393 = vmatpush1.xpose.msra.mxu0 0.0
        %1394 = vmatprep.subr.mxu0 0.0
        %1395 = vmatpush1.xpose.msra.mxu0 0.0
        %1396 = vmatprep.subr.mxu0 0.0
        %1397 = vmatpush1.xpose.msra.mxu0 0.0
        %1398 = vmatprep.subr.mxu0 0.0
        %1399 = vmatpush1.xpose.msra.mxu0 0.0
        %1400 = vmatprep.subr.mxu0 0.0
        %1401 = vmatpush1.xpose.msra.mxu0 0.0
        %1402 = vmatprep.mubr.f32.mxu0 0.0
        %1403 = vmatmul.mubr.f32.gmra.mrb[0].mxu0 %v475
        %v1404 = vpop.f32.mrb[0].mxu0
        %v1405 = vadd.f32 0.0, %v1404
        %v1406 = vpop.f32.mrb[0].mxu0
        %1407 = vdwg.mxu0
        %1408 = vmatprep.subr.mxu0 0.0
        %1409 = vmatpush1.xpose.msra.mxu0 %v702
        %1410 = vmatprep.subr.mxu0 0.0
        %1411 = vmatpush1.xpose.msra.mxu0 0.0
        %1412 = vmatprep.subr.mxu0 0.0
        %1413 = vmatpush1.xpose.msra.mxu0 0.0
        %1414 = vmatprep.subr.mxu0 0.0
        %1415 = vmatpush1.xpose.msra.mxu0 0.0
        %1416 = vmatprep.subr.mxu0 0.0
        %1417 = vmatpush1.xpose.msra.mxu0 0.0
        %1418 = vmatprep.subr.mxu0 0.0
        %1419 = vmatpush1.xpose.msra.mxu0 0.0
        %1420 = vmatprep.subr.mxu0 0.0
        %1421 = vmatpush1.xpose.msra.mxu0 0.0
        %1422 = vmatprep.subr.mxu0 0.0
        %1423 = vmatpush1.xpose.msra.mxu0 0.0
        %1424 = vmatprep.subr.mxu0 0.0
        %1425 = vmatpush1.xpose.msra.mxu0 0.0
        %1426 = vmatprep.subr.mxu0 0.0
        %1427 = vmatpush1.xpose.msra.mxu0 0.0
        %1428 = vmatprep.subr.mxu0 0.0
        %1429 = vmatpush1.xpose.msra.mxu0 0.0
        %1430 = vmatprep.subr.mxu0 0.0
        %1431 = vmatpush1.xpose.msra.mxu0 0.0
        %1432 = vmatprep.subr.mxu0 0.0
        %1433 = vmatpush1.xpose.msra.mxu0 0.0
        %1434 = vmatprep.subr.mxu0 0.0
        %1435 = vmatpush1.xpose.msra.mxu0 0.0
        %1436 = vmatprep.subr.mxu0 0.0
        %1437 = vmatpush1.xpose.msra.mxu0 0.0
        %1438 = vmatprep.subr.mxu0 0.0
        %1439 = vmatpush1.xpose.msra.mxu0 0.0
        %1440 = vmatprep.subr.mxu0 0.0
        %1441 = vmatpush1.xpose.msra.mxu0 0.0
        %1442 = vmatprep.subr.mxu0 0.0
        %1443 = vmatpush1.xpose.msra.mxu0 0.0
        %1444 = vmatprep.subr.mxu0 0.0
        %1445 = vmatpush1.xpose.msra.mxu0 0.0
        %1446 = vmatprep.subr.mxu0 0.0
        %1447 = vmatpush1.xpose.msra.mxu0 0.0
        %1448 = vmatprep.subr.mxu0 0.0
        %1449 = vmatpush1.xpose.msra.mxu0 0.0
        %1450 = vmatprep.subr.mxu0 0.0
        %1451 = vmatpush1.xpose.msra.mxu0 0.0
        %1452 = vmatprep.subr.mxu0 0.0
        %1453 = vmatpush1.xpose.msra.mxu0 0.0
        %1454 = vmatprep.subr.mxu0 0.0
        %1455 = vmatpush1.xpose.msra.mxu0 0.0
        %1456 = vmatprep.subr.mxu0 0.0
        %1457 = vmatpush1.xpose.msra.mxu0 0.0
        %1458 = vmatprep.subr.mxu0 0.0
        %1459 = vmatpush1.xpose.msra.mxu0 0.0
        %1460 = vmatprep.subr.mxu0 0.0
        %1461 = vmatpush1.xpose.msra.mxu0 0.0
        %1462 = vmatprep.subr.mxu0 0.0
        %1463 = vmatpush1.xpose.msra.mxu0 0.0
        %1464 = vmatprep.subr.mxu0 0.0
        %1465 = vmatpush1.xpose.msra.mxu0 0.0
        %1466 = vmatprep.subr.mxu0 0.0
        %1467 = vmatpush1.xpose.msra.mxu0 0.0
        %1468 = vmatprep.subr.mxu0 0.0
        %1469 = vmatpush1.xpose.msra.mxu0 0.0
        %1470 = vmatprep.subr.mxu0 0.0
        %1471 = vmatpush1.xpose.msra.mxu0 0.0
        %1472 = vmatprep.mubr.f32.mxu0 0.0
        %1473 = vmatmul.mubr.f32.gmra.mrb[0].mxu0 %v476
        %v1474 = vpop.f32.mrb[0].mxu0
        %v1475 = vadd.f32 0.0, %v1474
        %v1476 = vpop.f32.mrb[0].mxu0
        %1477 = vdwg.mxu0
        %1478 = vmatprep.subr.mxu0 0.0
        %1479 = vmatpush1.xpose.msra.mxu0 %v703
        %1480 = vmatprep.subr.mxu0 0.0
        %1481 = vmatpush1.xpose.msra.mxu0 0.0
        %1482 = vmatprep.subr.mxu0 0.0
        %1483 = vmatpush1.xpose.msra.mxu0 0.0
        %1484 = vmatprep.subr.mxu0 0.0
        %1485 = vmatpush1.xpose.msra.mxu0 0.0
        %1486 = vmatprep.subr.mxu0 0.0
        %1487 = vmatpush1.xpose.msra.mxu0 0.0
        %1488 = vmatprep.subr.mxu0 0.0
        %1489 = vmatpush1.xpose.msra.mxu0 0.0
        %1490 = vmatprep.subr.mxu0 0.0
        %1491 = vmatpush1.xpose.msra.mxu0 0.0
        %1492 = vmatprep.subr.mxu0 0.0
        %1493 = vmatpush1.xpose.msra.mxu0 0.0
        %1494 = vmatprep.subr.mxu0 0.0
        %1495 = vmatpush1.xpose.msra.mxu0 0.0
        %1496 = vmatprep.subr.mxu0 0.0
        %1497 = vmatpush1.xpose.msra.mxu0 0.0
        %1498 = vmatprep.subr.mxu0 0.0
        %1499 = vmatpush1.xpose.msra.mxu0 0.0
        %1500 = vmatprep.subr.mxu0 0.0
        %1501 = vmatpush1.xpose.msra.mxu0 0.0
        %1502 = vmatprep.subr.mxu0 0.0
        %1503 = vmatpush1.xpose.msra.mxu0 0.0
        %1504 = vmatprep.subr.mxu0 0.0
        %1505 = vmatpush1.xpose.msra.mxu0 0.0
        %1506 = vmatprep.subr.mxu0 0.0
        %1507 = vmatpush1.xpose.msra.mxu0 0.0
        %1508 = vmatprep.subr.mxu0 0.0
        %1509 = vmatpush1.xpose.msra.mxu0 0.0
        %1510 = vmatprep.subr.mxu0 0.0
        %1511 = vmatpush1.xpose.msra.mxu0 0.0
        %1512 = vmatprep.subr.mxu0 0.0
        %1513 = vmatpush1.xpose.msra.mxu0 0.0
        %1514 = vmatprep.subr.mxu0 0.0
        %1515 = vmatpush1.xpose.msra.mxu0 0.0
        %1516 = vmatprep.subr.mxu0 0.0
        %1517 = vmatpush1.xpose.msra.mxu0 0.0
        %1518 = vmatprep.subr.mxu0 0.0
        %1519 = vmatpush1.xpose.msra.mxu0 0.0
        %1520 = vmatprep.subr.mxu0 0.0
        %1521 = vmatpush1.xpose.msra.mxu0 0.0
        %1522 = vmatprep.subr.mxu0 0.0
        %1523 = vmatpush1.xpose.msra.mxu0 0.0
        %1524 = vmatprep.subr.mxu0 0.0
        %1525 = vmatpush1.xpose.msra.mxu0 0.0
        %1526 = vmatprep.subr.mxu0 0.0
        %1527 = vmatpush1.xpose.msra.mxu0 0.0
        %1528 = vmatprep.subr.mxu0 0.0
        %1529 = vmatpush1.xpose.msra.mxu0 0.0
        %1530 = vmatprep.subr.mxu0 0.0
        %1531 = vmatpush1.xpose.msra.mxu0 0.0
        %1532 = vmatprep.subr.mxu0 0.0
        %1533 = vmatpush1.xpose.msra.mxu0 0.0
        %1534 = vmatprep.subr.mxu0 0.0
        %1535 = vmatpush1.xpose.msra.mxu0 0.0
        %1536 = vmatprep.subr.mxu0 0.0
        %1537 = vmatpush1.xpose.msra.mxu0 0.0
        %1538 = vmatprep.subr.mxu0 0.0
        %1539 = vmatpush1.xpose.msra.mxu0 0.0
        %1540 = vmatprep.subr.mxu0 0.0
        %1541 = vmatpush1.xpose.msra.mxu0 0.0
        %1542 = vmatprep.mubr.f32.mxu0 0.0
        %1543 = vmatmul.mubr.f32.gmra.mrb[0].mxu0 %v477
        %v1544 = vpop.f32.mrb[0].mxu0
        %v1545 = vadd.f32 0.0, %v1544
        %v1546 = vpop.f32.mrb[0].mxu0
        %1547 = vdwg.mxu0
        %1548 = vmatprep.subr.mxu0 0.0
        %1549 = vmatpush1.xpose.msra.mxu0 %v704
        %1550 = vmatprep.subr.mxu0 0.0
        %1551 = vmatpush1.xpose.msra.mxu0 0.0
        %1552 = vmatprep.subr.mxu0 0.0
        %1553 = vmatpush1.xpose.msra.mxu0 0.0
        %1554 = vmatprep.subr.mxu0 0.0
        %1555 = vmatpush1.xpose.msra.mxu0 0.0
        %1556 = vmatprep.subr.mxu0 0.0
        %1557 = vmatpush1.xpose.msra.mxu0 0.0
        %1558 = vmatprep.subr.mxu0 0.0
        %1559 = vmatpush1.xpose.msra.mxu0 0.0
        %1560 = vmatprep.subr.mxu0 0.0
        %1561 = vmatpush1.xpose.msra.mxu0 0.0
        %1562 = vmatprep.subr.mxu0 0.0
        %1563 = vmatpush1.xpose.msra.mxu0 0.0
        %1564 = vmatprep.subr.mxu0 0.0
        %1565 = vmatpush1.xpose.msra.mxu0 0.0
        %1566 = vmatprep.subr.mxu0 0.0
        %1567 = vmatpush1.xpose.msra.mxu0 0.0
        %1568 = vmatprep.subr.mxu0 0.0
        %1569 = vmatpush1.xpose.msra.mxu0 0.0
        %1570 = vmatprep.subr.mxu0 0.0
        %1571 = vmatpush1.xpose.msra.mxu0 0.0
        %1572 = vmatprep.subr.mxu0 0.0
        %1573 = vmatpush1.xpose.msra.mxu0 0.0
        %1574 = vmatprep.subr.mxu0 0.0
        %1575 = vmatpush1.xpose.msra.mxu0 0.0
        %1576 = vmatprep.subr.mxu0 0.0
        %1577 = vmatpush1.xpose.msra.mxu0 0.0
        %1578 = vmatprep.subr.mxu0 0.0
        %1579 = vmatpush1.xpose.msra.mxu0 0.0
        %1580 = vmatprep.subr.mxu0 0.0
        %1581 = vmatpush1.xpose.msra.mxu0 0.0
        %1582 = vmatprep.subr.mxu0 0.0
        %1583 = vmatpush1.xpose.msra.mxu0 0.0
        %1584 = vmatprep.subr.mxu0 0.0
        %1585 = vmatpush1.xpose.msra.mxu0 0.0
        %1586 = vmatprep.subr.mxu0 0.0
        %1587 = vmatpush1.xpose.msra.mxu0 0.0
        %1588 = vmatprep.subr.mxu0 0.0
        %1589 = vmatpush1.xpose.msra.mxu0 0.0
        %1590 = vmatprep.subr.mxu0 0.0
        %1591 = vmatpush1.xpose.msra.mxu0 0.0
        %1592 = vmatprep.subr.mxu0 0.0
        %1593 = vmatpush1.xpose.msra.mxu0 0.0
        %1594 = vmatprep.subr.mxu0 0.0
        %1595 = vmatpush1.xpose.msra.mxu0 0.0
        %1596 = vmatprep.subr.mxu0 0.0
        %1597 = vmatpush1.xpose.msra.mxu0 0.0
        %1598 = vmatprep.subr.mxu0 0.0
        %1599 = vmatpush1.xpose.msra.mxu0 0.0
        %1600 = vmatprep.subr.mxu0 0.0
        %1601 = vmatpush1.xpose.msra.mxu0 0.0
        %1602 = vmatprep.subr.mxu0 0.0
        %1603 = vmatpush1.xpose.msra.mxu0 0.0
        %1604 = vmatprep.subr.mxu0 0.0
        %1605 = vmatpush1.xpose.msra.mxu0 0.0
        %1606 = vmatprep.subr.mxu0 0.0
        %1607 = vmatpush1.xpose.msra.mxu0 0.0
        %1608 = vmatprep.subr.mxu0 0.0
        %1609 = vmatpush1.xpose.msra.mxu0 0.0
        %1610 = vmatprep.subr.mxu0 0.0
        %1611 = vmatpush1.xpose.msra.mxu0 0.0
        %1612 = vmatprep.mubr.f32.mxu0 0.0
        %1613 = vmatmul.mubr.f32.gmra.mrb[0].mxu0 %v478
        %v1614 = vpop.f32.mrb[0].mxu0
        %v1615 = vadd.f32 0.0, %v1614
        %v1616 = vpop.f32.mrb[0].mxu0
        %1617 = vdwg.mxu0
        %1618 = vmatprep.subr.mxu0 0.0
        %1619 = vmatpush1.xpose.msra.mxu0 %v705
        %1620 = vmatprep.subr.mxu0 0.0
        %1621 = vmatpush1.xpose.msra.mxu0 0.0
        %1622 = vmatprep.subr.mxu0 0.0
        %1623 = vmatpush1.xpose.msra.mxu0 0.0
        %1624 = vmatprep.subr.mxu0 0.0
        %1625 = vmatpush1.xpose.msra.mxu0 0.0
        %1626 = vmatprep.subr.mxu0 0.0
        %1627 = vmatpush1.xpose.msra.mxu0 0.0
        %1628 = vmatprep.subr.mxu0 0.0
        %1629 = vmatpush1.xpose.msra.mxu0 0.0
        %1630 = vmatprep.subr.mxu0 0.0
        %1631 = vmatpush1.xpose.msra.mxu0 0.0
        %1632 = vmatprep.subr.mxu0 0.0
        %1633 = vmatpush1.xpose.msra.mxu0 0.0
        %1634 = vmatprep.subr.mxu0 0.0
        %1635 = vmatpush1.xpose.msra.mxu0 0.0
        %1636 = vmatprep.subr.mxu0 0.0
        %1637 = vmatpush1.xpose.msra.mxu0 0.0
        %1638 = vmatprep.subr.mxu0 0.0
        %1639 = vmatpush1.xpose.msra.mxu0 0.0
        %1640 = vmatprep.subr.mxu0 0.0
        %1641 = vmatpush1.xpose.msra.mxu0 0.0
        %1642 = vmatprep.subr.mxu0 0.0
        %1643 = vmatpush1.xpose.msra.mxu0 0.0
        %1644 = vmatprep.subr.mxu0 0.0
        %1645 = vmatpush1.xpose.msra.mxu0 0.0
        %1646 = vmatprep.subr.mxu0 0.0
        %1647 = vmatpush1.xpose.msra.mxu0 0.0
        %1648 = vmatprep.subr.mxu0 0.0
        %1649 = vmatpush1.xpose.msra.mxu0 0.0
        %1650 = vmatprep.subr.mxu0 0.0
        %1651 = vmatpush1.xpose.msra.mxu0 0.0
        %1652 = vmatprep.subr.mxu0 0.0
        %1653 = vmatpush1.xpose.msra.mxu0 0.0
        %1654 = vmatprep.subr.mxu0 0.0
        %1655 = vmatpush1.xpose.msra.mxu0 0.0
        %1656 = vmatprep.subr.mxu0 0.0
        %1657 = vmatpush1.xpose.msra.mxu0 0.0
        %1658 = vmatprep.subr.mxu0 0.0
        %1659 = vmatpush1.xpose.msra.mxu0 0.0
        %1660 = vmatprep.subr.mxu0 0.0
        %1661 = vmatpush1.xpose.msra.mxu0 0.0
        %1662 = vmatprep.subr.mxu0 0.0
        %1663 = vmatpush1.xpose.msra.mxu0 0.0
        %1664 = vmatprep.subr.mxu0 0.0
        %1665 = vmatpush1.xpose.msra.mxu0 0.0
        %1666 = vmatprep.subr.mxu0 0.0
        %1667 = vmatpush1.xpose.msra.mxu0 0.0
        %1668 = vmatprep.subr.mxu0 0.0
        %1669 = vmatpush1.xpose.msra.mxu0 0.0
        %1670 = vmatprep.subr.mxu0 0.0
        %1671 = vmatpush1.xpose.msra.mxu0 0.0
        %1672 = vmatprep.subr.mxu0 0.0
        %1673 = vmatpush1.xpose.msra.mxu0 0.0
        %1674 = vmatprep.subr.mxu0 0.0
        %1675 = vmatpush1.xpose.msra.mxu0 0.0
        %1676 = vmatprep.subr.mxu0 0.0
        %1677 = vmatpush1.xpose.msra.mxu0 0.0
        %1678 = vmatprep.subr.mxu0 0.0
        %1679 = vmatpush1.xpose.msra.mxu0 0.0
        %1680 = vmatprep.subr.mxu0 0.0
        %1681 = vmatpush1.xpose.msra.mxu0 0.0
        %1682 = vmatprep.mubr.f32.mxu0 0.0
        %1683 = vmatmul.mubr.f32.gmra.mrb[0].mxu0 %v479
        %v1684 = vpop.f32.mrb[0].mxu0
        %v1685 = vadd.f32 0.0, %v1684
        %v1686 = vpop.f32.mrb[0].mxu0
        %1687 = vdwg.mxu0
        %1688 = vmatprep.subr.mxu0 0.0
        %1689 = vmatpush1.xpose.msra.mxu0 %v706
        %1690 = vmatprep.subr.mxu0 0.0
        %1691 = vmatpush1.xpose.msra.mxu0 0.0
        %1692 = vmatprep.subr.mxu0 0.0
        %1693 = vmatpush1.xpose.msra.mxu0 0.0
        %1694 = vmatprep.subr.mxu0 0.0
        %1695 = vmatpush1.xpose.msra.mxu0 0.0
        %1696 = vmatprep.subr.mxu0 0.0
        %1697 = vmatpush1.xpose.msra.mxu0 0.0
        %1698 = vmatprep.subr.mxu0 0.0
        %1699 = vmatpush1.xpose.msra.mxu0 0.0
        %1700 = vmatprep.subr.mxu0 0.0
        %1701 = vmatpush1.xpose.msra.mxu0 0.0
        %1702 = vmatprep.subr.mxu0 0.0
        %1703 = vmatpush1.xpose.msra.mxu0 0.0
        %1704 = vmatprep.subr.mxu0 0.0
        %1705 = vmatpush1.xpose.msra.mxu0 0.0
        %1706 = vmatprep.subr.mxu0 0.0
        %1707 = vmatpush1.xpose.msra.mxu0 0.0
        %1708 = vmatprep.subr.mxu0 0.0
        %1709 = vmatpush1.xpose.msra.mxu0 0.0
        %1710 = vmatprep.subr.mxu0 0.0
        %1711 = vmatpush1.xpose.msra.mxu0 0.0
        %1712 = vmatprep.subr.mxu0 0.0
        %1713 = vmatpush1.xpose.msra.mxu0 0.0
        %1714 = vmatprep.subr.mxu0 0.0
        %1715 = vmatpush1.xpose.msra.mxu0 0.0
        %1716 = vmatprep.subr.mxu0 0.0
        %1717 = vmatpush1.xpose.msra.mxu0 0.0
        %1718 = vmatprep.subr.mxu0 0.0
        %1719 = vmatpush1.xpose.msra.mxu0 0.0
        %1720 = vmatprep.subr.mxu0 0.0
        %1721 = vmatpush1.xpose.msra.mxu0 0.0
        %1722 = vmatprep.subr.mxu0 0.0
        %1723 = vmatpush1.xpose.msra.mxu0 0.0
        %1724 = vmatprep.subr.mxu0 0.0
        %1725 = vmatpush1.xpose.msra.mxu0 0.0
        %1726 = vmatprep.subr.mxu0 0.0
        %1727 = vmatpush1.xpose.msra.mxu0 0.0
        %1728 = vmatprep.subr.mxu0 0.0
        %1729 = vmatpush1.xpose.msra.mxu0 0.0
        %1730 = vmatprep.subr.mxu0 0.0
        %1731 = vmatpush1.xpose.msra.mxu0 0.0
        %1732 = vmatprep.subr.mxu0 0.0
        %1733 = vmatpush1.xpose.msra.mxu0 0.0
        %1734 = vmatprep.subr.mxu0 0.0
        %1735 = vmatpush1.xpose.msra.mxu0 0.0
        %1736 = vmatprep.subr.mxu0 0.0
        %1737 = vmatpush1.xpose.msra.mxu0 0.0
        %1738 = vmatprep.subr.mxu0 0.0
        %1739 = vmatpush1.xpose.msra.mxu0 0.0
        %1740 = vmatprep.subr.mxu0 0.0
        %1741 = vmatpush1.xpose.msra.mxu0 0.0
        %1742 = vmatprep.subr.mxu0 0.0
        %1743 = vmatpush1.xpose.msra.mxu0 0.0
        %1744 = vmatprep.subr.mxu0 0.0
        %1745 = vmatpush1.xpose.msra.mxu0 0.0
        %1746 = vmatprep.subr.mxu0 0.0
        %1747 = vmatpush1.xpose.msra.mxu0 0.0
        %1748 = vmatprep.subr.mxu0 0.0
        %1749 = vmatpush1.xpose.msra.mxu0 0.0
        %1750 = vmatprep.subr.mxu0 0.0
        %1751 = vmatpush1.xpose.msra.mxu0 0.0
        %1752 = vmatprep.mubr.f32.mxu0 0.0
        %1753 = vmatmul.mubr.f32.gmra.mrb[0].mxu0 %v480
        %v1754 = vpop.f32.mrb[0].mxu0
        %v1755 = vadd.f32 0.0, %v1754
        %v1756 = vpop.f32.mrb[0].mxu0
        %1757 = vdwg.mxu0
        %1758 = vmatprep.subr.mxu0 0.0
        %1759 = vmatpush1.xpose.msra.mxu0 %v707
        %1760 = vmatprep.subr.mxu0 0.0
        %1761 = vmatpush1.xpose.msra.mxu0 0.0
        %1762 = vmatprep.subr.mxu0 0.0
        %1763 = vmatpush1.xpose.msra.mxu0 0.0
        %1764 = vmatprep.subr.mxu0 0.0
        %1765 = vmatpush1.xpose.msra.mxu0 0.0
        %1766 = vmatprep.subr.mxu0 0.0
        %1767 = vmatpush1.xpose.msra.mxu0 0.0
        %1768 = vmatprep.subr.mxu0 0.0
        %1769 = vmatpush1.xpose.msra.mxu0 0.0
        %1770 = vmatprep.subr.mxu0 0.0
        %1771 = vmatpush1.xpose.msra.mxu0 0.0
        %1772 = vmatprep.subr.mxu0 0.0
        %1773 = vmatpush1.xpose.msra.mxu0 0.0
        %1774 = vmatprep.subr.mxu0 0.0
        %1775 = vmatpush1.xpose.msra.mxu0 0.0
        %1776 = vmatprep.subr.mxu0 0.0
        %1777 = vmatpush1.xpose.msra.mxu0 0.0
        %1778 = vmatprep.subr.mxu0 0.0
        %1779 = vmatpush1.xpose.msra.mxu0 0.0
        %1780 = vmatprep.subr.mxu0 0.0
        %1781 = vmatpush1.xpose.msra.mxu0 0.0
        %1782 = vmatprep.subr.mxu0 0.0
        %1783 = vmatpush1.xpose.msra.mxu0 0.0
        %1784 = vmatprep.subr.mxu0 0.0
        %1785 = vmatpush1.xpose.msra.mxu0 0.0
        %1786 = vmatprep.subr.mxu0 0.0
        %1787 = vmatpush1.xpose.msra.mxu0 0.0
        %1788 = vmatprep.subr.mxu0 0.0
        %1789 = vmatpush1.xpose.msra.mxu0 0.0
        %1790 = vmatprep.subr.mxu0 0.0
        %1791 = vmatpush1.xpose.msra.mxu0 0.0
        %1792 = vmatprep.subr.mxu0 0.0
        %1793 = vmatpush1.xpose.msra.mxu0 0.0
        %1794 = vmatprep.subr.mxu0 0.0
        %1795 = vmatpush1.xpose.msra.mxu0 0.0
        %1796 = vmatprep.subr.mxu0 0.0
        %1797 = vmatpush1.xpose.msra.mxu0 0.0
        %1798 = vmatprep.subr.mxu0 0.0
        %1799 = vmatpush1.xpose.msra.mxu0 0.0
        %1800 = vmatprep.subr.mxu0 0.0
        %1801 = vmatpush1.xpose.msra.mxu0 0.0
        %1802 = vmatprep.subr.mxu0 0.0
        %1803 = vmatpush1.xpose.msra.mxu0 0.0
        %1804 = vmatprep.subr.mxu0 0.0
        %1805 = vmatpush1.xpose.msra.mxu0 0.0
        %1806 = vmatprep.subr.mxu0 0.0
        %1807 = vmatpush1.xpose.msra.mxu0 0.0
        %1808 = vmatprep.subr.mxu0 0.0
        %1809 = vmatpush1.xpose.msra.mxu0 0.0
        %1810 = vmatprep.subr.mxu0 0.0
        %1811 = vmatpush1.xpose.msra.mxu0 0.0
        %1812 = vmatprep.subr.mxu0 0.0
        %1813 = vmatpush1.xpose.msra.mxu0 0.0
        %1814 = vmatprep.subr.mxu0 0.0
        %1815 = vmatpush1.xpose.msra.mxu0 0.0
        %1816 = vmatprep.subr.mxu0 0.0
        %1817 = vmatpush1.xpose.msra.mxu0 0.0
        %1818 = vmatprep.subr.mxu0 0.0
        %1819 = vmatpush1.xpose.msra.mxu0 0.0
        %1820 = vmatprep.subr.mxu0 0.0
        %1821 = vmatpush1.xpose.msra.mxu0 0.0
        %1822 = vmatprep.mubr.f32.mxu0 0.0
        %1823 = vmatmul.mubr.f32.gmra.mrb[0].mxu0 %v481
        %v1824 = vpop.f32.mrb[0].mxu0
        %v1825 = vadd.f32 0.0, %v1824
        %v1826 = vpop.f32.mrb[0].mxu0
        %1827 = vdwg.mxu0
        %v1828 = vld [vmem:[%s1] sm:$0x3]
        %v1829 = vmul.f32 %v775, %v1828
        %v1830 = vmul.f32 %v845, %v1828
        %v1831 = vmul.f32 %v915, %v1828
        %v1832 = vmul.f32 %v985, %v1828
        %v1833 = vmul.f32 %v1055, %v1828
        %v1834 = vmul.f32 %v1125, %v1828
        %v1835 = vmul.f32 %v1195, %v1828
        %v1836 = vmul.f32 %v1265, %v1828
        %vm1837 = vcmask 41984
        %v1838 = vsel %vm1837, %v1829, 0.0
        %v1839 = vsel %vm1837, %v1830, 0.0
        %v1840 = vadd.f32 %v1838, %v1839
        %v1841 = vsel %vm1837, %v1831, 0.0
        %v1842 = vadd.f32 %v1840, %v1841
        %v1843 = vsel %vm1837, %v1832, 0.0
        %v1844 = vadd.f32 %v1842, %v1843
        %v1845 = vsel %vm1837, %v1833, 0.0
        %v1846 = vadd.f32 %v1844, %v1845
        %v1847 = vsel %vm1837, %v1834, 0.0
        %v1848 = vadd.f32 %v1846, %v1847
        %v1849 = vsel %vm1837, %v1835, 0.0
        %v1850 = vadd.f32 %v1848, %v1849
        %v1851 = vsel %vm1837, %v1836, 0.0
        %v1852 = vadd.f32 %v1850, %v1851
        %1853 = vadd.xlane.f32.xlu0 %v1852
        %v1854 = vpop.xlane.xlu0 %1853
        %v1855 = vrot.slane %v1854, 4
        %v1856 = vadd.f32 %v1854, %v1855
        %v1857 = vrot.slane %v1856, 2
        %v1858 = vadd.f32 %v1856, %v1857
        %v1859 = vrot.slane %v1858, 1
        %v1860 = vadd.f32 %v1858, %v1859
        %s1861 = vtos %v1860
        %v1862 = vstv %s1861
        %v1863 = vld [vmem:[%s2] sm:$0x3]
        %v1864 = vmul.f32 %v1335, %v1863
        %v1865 = vmul.f32 %v1405, %v1863
        %v1866 = vmul.f32 %v1475, %v1863
        %v1867 = vmul.f32 %v1545, %v1863
        %v1868 = vmul.f32 %v1615, %v1863
        %v1869 = vmul.f32 %v1685, %v1863
        %v1870 = vmul.f32 %v1755, %v1863
        %v1871 = vmul.f32 %v1825, %v1863
        %vm1872 = vcmask 25600
        %v1873 = vsel %vm1872, %v1864, 0.0
        %v1874 = vsel %vm1872, %v1865, 0.0
        %v1875 = vadd.f32 %v1873, %v1874
        %v1876 = vsel %vm1872, %v1866, 0.0
        %v1877 = vadd.f32 %v1875, %v1876
        %v1878 = vsel %vm1872, %v1867, 0.0
        %v1879 = vadd.f32 %v1877, %v1878
        %v1880 = vsel %vm1872, %v1868, 0.0
        %v1881 = vadd.f32 %v1879, %v1880
        %v1882 = vsel %vm1872, %v1869, 0.0
        %v1883 = vadd.f32 %v1881, %v1882
        %v1884 = vsel %vm1872, %v1870, 0.0
        %v1885 = vadd.f32 %v1883, %v1884
        %v1886 = vsel %vm1872, %v1871, 0.0
        %v1887 = vadd.f32 %v1885, %v1886
        %1888 = vadd.xlane.f32.xlu0 %v1887
        %v1889 = vpop.xlane.xlu0 %1888
        %v1890 = vrot.slane %v1889, 4
        %v1891 = vadd.f32 %v1889, %v1890
        %v1892 = vrot.slane %v1891, 2
        %v1893 = vadd.f32 %v1891, %v1892
        %v1894 = vrot.slane %v1893, 1
        %v1895 = vadd.f32 %v1893, %v1894
        %s1896 = vtos %v1895
        %v1897 = vstv %s1896
        %v1898 = vadd.f32 %v1862, %v1897
        %v1899 = vmul.f32 %v1898, -0.004464286
        %1900 = vst [vmem:[%s335] sm:$0x1] %v1899
        %v1901 = vld [vmem:[%s346] sm:$0x3]
        %v1902 = vld [vmem:[%s346 + $0x2] sm:$0x3]
        %v1903 = vld [vmem:[%s346 + $0x4] sm:$0x3]
        %v1904 = vld [vmem:[%s346 + $0x6] sm:$0x3]
        %v1905 = vld [vmem:[%s346 + $0x8] sm:$0x3]
        %v1906 = vld [vmem:[%s346 + $0xa] sm:$0x3]
        %v1907 = vld [vmem:[%s346 + $0xc] sm:$0x3]
        %v1908 = vld [vmem:[%s346 + $0xe] sm:$0x3]
        %v1909 = vsel %vm393, %v1901, 0.0
        %v1910 = vrot.slane %v1909, 4
        %v1911 = vadd.f32 %v1909, %v1910
        %v1912 = vrot.slane %v1911, 2
        %v1913 = vadd.f32 %v1911, %v1912
        %v1914 = vrot.slane %v1913, 1
        %v1915 = vadd.f32 %v1913, %v1914
        %v1916 = vsel %vm393, %v1902, 0.0
        %v1917 = vrot.slane %v1916, 4
        %v1918 = vadd.f32 %v1916, %v1917
        %v1919 = vrot.slane %v1918, 2
        %v1920 = vadd.f32 %v1918, %v1919
        %v1921 = vrot.slane %v1920, 1
        %v1922 = vadd.f32 %v1920, %v1921
        %v1923 = vsel %vm393, %v1903, 0.0
        %v1924 = vrot.slane %v1923, 4
        %v1925 = vadd.f32 %v1923, %v1924
        %v1926 = vrot.slane %v1925, 2
        %v1927 = vadd.f32 %v1925, %v1926
        %v1928 = vrot.slane %v1927, 1
        %v1929 = vadd.f32 %v1927, %v1928
        %v1930 = vsel %vm393, %v1904, 0.0
        %v1931 = vrot.slane %v1930, 4
        %v1932 = vadd.f32 %v1930, %v1931
        %v1933 = vrot.slane %v1932, 2
        %v1934 = vadd.f32 %v1932, %v1933
        %v1935 = vrot.slane %v1934, 1
        %v1936 = vadd.f32 %v1934, %v1935
        %v1937 = vsel %vm393, %v1905, 0.0
        %v1938 = vrot.slane %v1937, 4
        %v1939 = vadd.f32 %v1937, %v1938
        %v1940 = vrot.slane %v1939, 2
        %v1941 = vadd.f32 %v1939, %v1940
        %v1942 = vrot.slane %v1941, 1
        %v1943 = vadd.f32 %v1941, %v1942
        %v1944 = vsel %vm393, %v1906, 0.0
        %v1945 = vrot.slane %v1944, 4
        %v1946 = vadd.f32 %v1944, %v1945
        %v1947 = vrot.slane %v1946, 2
        %v1948 = vadd.f32 %v1946, %v1947
        %v1949 = vrot.slane %v1948, 1
        %v1950 = vadd.f32 %v1948, %v1949
        %v1951 = vsel %vm393, %v1907, 0.0
        %v1952 = vrot.slane %v1951, 4
        %v1953 = vadd.f32 %v1951, %v1952
        %v1954 = vrot.slane %v1953, 2
        %v1955 = vadd.f32 %v1953, %v1954
        %v1956 = vrot.slane %v1955, 1
        %v1957 = vadd.f32 %v1955, %v1956
        %v1958 = vsel %vm393, %v1908, 0.0
        %v1959 = vrot.slane %v1958, 4
        %v1960 = vadd.f32 %v1958, %v1959
        %v1961 = vrot.slane %v1960, 2
        %v1962 = vadd.f32 %v1960, %v1961
        %v1963 = vrot.slane %v1962, 1
        %v1964 = vadd.f32 %v1962, %v1963
        %v1965 = vadd.f32 %v1915, %v1922
        %v1966 = vadd.f32 %v1965, %v1929
        %v1967 = vadd.f32 %v1966, %v1936
        %v1968 = vadd.f32 %v1967, %v1943
        %v1969 = vadd.f32 %v1968, %v1950
        %v1970 = vadd.f32 %v1969, %v1957
        %v1971 = vadd.f32 %v1970, %v1964
        %1972 = vst [vmem:[%s341] sm:$0x1] %v1971
        %s1973 = sand.u32 %s197, 1
        %s1974 = scalar_lea.sflag [#allocation4], %s1973
        %s1975 = sand.u32 %s197, 1
        %s1976 = scalar_lea.vmem [#allocation3], %s1975
        %s1977 = sand.u32 %s223, 1
        %s1978 = scalar_lea.sflag [#allocation6], %s1977
        %s1979 = sand.u32 %s223, 1
        %s1980 = scalar_lea.vmem [#allocation5], %s1979
        // Predicated region
        $region49: #{tpu_custom_call.1} parent=47 // pred_check
          %p1981 = pneg %p207
        $region50: #{tpu_custom_call.1} parent=47 // pred_check_branch
          %1983 = sbr.rel (%p1981) target = $region52
        $region51: #{tpu_custom_call.1} parent=47 // pred_region
          %s1985 = ssub.s32 16, 16
          %1986 = vsyncadd %s1974, %s1985
          %s1987 = smul.addr %s27, 16
          %s1988 = scalar_lea.hbm %s7, %s1987
          %s1990 = sshll.u32 %s1976, 4
          %s1991 = int_to_ptr.vmem [resolvable:$true] %s1990
          %1993 = dma.vmem_to_hbm [thread:$0]  %s1991, 16, %s1988, %s1974
        $region52: #{tpu_custom_call.1} parent=47 // pred_fallthru
          _
        // Predicated region
        $region53: #{tpu_custom_call.1} parent=47 // pred_check
          %p1994 = pneg %p233
        $region54: #{tpu_custom_call.1} parent=47 // pred_check_branch
          %1996 = sbr.rel (%p1994) target = $region56
        $region55: #{tpu_custom_call.1} parent=47 // pred_region
          %s1998 = ssub.s32 16, 16
          %1999 = vsyncadd %s1978, %s1998
          %s2000 = smul.addr %s27, 16
          %s2001 = scalar_lea.hbm %s8, %s2000
          %s2003 = sshll.u32 %s1980, 4
          %s2004 = int_to_ptr.vmem [resolvable:$true] %s2003
          %2006 = dma.vmem_to_hbm [thread:$0]  %s2004, 16, %s2001, %s1978
        $region56: #{tpu_custom_call.1} parent=47 // pred_fallthru
          _
      $region48: #{tpu_custom_call.1} parent=5 // pred_fallthru
        _
      %p2007 = scmp.le.s32.totalorder 2, %s22
      // Predicated region
      $region57: #{tpu_custom_call.1} parent=5 // pred_check
        %p2008 = pneg %p2007
      $region58: #{tpu_custom_call.1} parent=5 // pred_check_branch
        %2010 = sbr.rel (%p2008) target = $region60
      $region59: #{tpu_custom_call.1} parent=5 // pred_region
        %s2011 = ssub.s32 %s22, 2
        // Predicated region
        $region61: #{tpu_custom_call.1} parent=59 // pred_check
          %p2012 = pneg %p213
        $region62: #{tpu_custom_call.1} parent=59 // pred_check_branch
          %2014 = sbr.rel (%p2012) target = $region64
        $region63: #{tpu_custom_call.1} parent=59 // pred_region
          %s2015 = sand.u32 %s198, 1
          %s2016 = scalar_lea.sflag [#allocation4], %s2015
          %s2017 = sand.u32 %s198, 1
          %s2018 = scalar_lea.vmem [#allocation3], %s2017
          %2019 = dma.done %s2016, 16
        $region64: #{tpu_custom_call.1} parent=59 // pred_fallthru
          _
        // Predicated region
        $region65: #{tpu_custom_call.1} parent=59 // pred_check
          %p2020 = pneg %p239
        $region66: #{tpu_custom_call.1} parent=59 // pred_check_branch
          %2022 = sbr.rel (%p2020) target = $region68
        $region67: #{tpu_custom_call.1} parent=59 // pred_region
          %s2023 = sand.u32 %s224, 1
          %s2024 = scalar_lea.sflag [#allocation6], %s2023
          %s2025 = sand.u32 %s224, 1
          %s2026 = scalar_lea.vmem [#allocation5], %s2025
          %2027 = dma.done %s2024, 16
        $region68: #{tpu_custom_call.1} parent=59 // pred_fallthru
          _
      $region60: #{tpu_custom_call.1} parent=5 // pred_fallthru
        _
    $region6: #{tpu_custom_call.1} parent=1 // loop_footer
      %s26 = sadd.s32 1, %s22
    $region7: #{tpu_custom_call.1} parent=1 // loop_footer_branch
      %21 = sbr.rel target = $region3
    $region8: #{tpu_custom_call.1} parent=1 // loop_exit
      _
    %2028 = vsyncpa [#allocation4], 1
    %s2029 = scalar_lea.sflag [#allocation4], 1
    %2030 = vsyncpa %s2029, 1
    %2031 = vsyncpa [#allocation6], 1
    %s2032 = scalar_lea.sflag [#allocation6], 1
    %2033 = vsyncpa %s2032, 1

</llo_original>
